<compile_context>
chip_gen: v7x
topology: tpu7x:2x2x1
jax: 0.10.0
libtpu: 0.0.40
codegen_flags: <defaults>
</compile_context>

<pallas_src>
import functools
import math

import jax
import jax.numpy as jnp
from jax import lax
from jax.experimental import pallas as pl
from jax.experimental.pallas import tpu as pltpu


def _self_attn_kernel(x_ref, wqkv_ref, wo_ref, b_ref, o_ref, *, num_heads):
    TB, S, E = x_ref.shape
    H = num_heads
    D = E // H

    wqkv = wqkv_ref[...]                       # [E, 3E] bf16 (1/sqrt(D) folded into q cols)
    wo = wo_ref[...]                           # [E, E]  bf16
    bias = b_ref[...]                          # [1, 4E] f32  (bq*scale | bk | bv | bo)
    b_qkv = bias[:, :3 * E]                    # [1, 3E]
    b_o = bias[:, 3 * E:]                      # [1, E]

    for tb in range(TB):                       # static unroll over batch rows in the block
        x = x_ref[tb]                          # [S, E] f32
        xm = x.astype(jnp.bfloat16)

        # Fused lane-dense QKV projection: ONE MXU pass [S,E] @ [E,3E], f32 accumulate.
        qkv = jnp.dot(xm, wqkv, preferred_element_type=jnp.float32) + b_qkv   # [S, 3E] f32

        out = jnp.zeros((S, E), jnp.float32)
        for h in range(H):                     # per-head score/PV matmuls via static lane slices
            qh = qkv[:, h * D:(h + 1) * D].astype(jnp.bfloat16)               # scale pre-folded
            kh = qkv[:, E + h * D:E + (h + 1) * D].astype(jnp.bfloat16)
            vh = qkv[:, 2 * E + h * D:2 * E + (h + 1) * D].astype(jnp.bfloat16)

            # q @ k^T without an explicit transpose (contract last dim of both operands).
            s = lax.dot_general(qh, kh, (((1,), (1,)), ((), ())),
                                preferred_element_type=jnp.float32)           # [S, S]

            # Numerically stable softmax, all in f32, exact divide.
            m = jnp.max(s, axis=-1, keepdims=True)
            p = jnp.exp(s - m)
            p = p / jnp.sum(p, axis=-1, keepdims=True)

            o_h = jnp.dot(p.astype(jnp.bfloat16), vh,
                          preferred_element_type=jnp.float32)                 # [S, D]

            # Summing per-head partials o_h @ Wo[hD:(h+1)D, :] over h == concat(heads) @ Wo.
            out = out + jnp.dot(o_h.astype(jnp.bfloat16), wo[h * D:(h + 1) * D, :],
                                preferred_element_type=jnp.float32)           # [S, E]

        o_ref[tb] = (out + b_o + x).astype(o_ref.dtype)        # out-proj bias + residual add


def _pick_batch_tile(B, S, E):
    """Batch rows per grid step.

    Single-TensorCore chips (v5e/v6e): one big block -> one grid step (per-step
    overhead ~0.35us dominates a ~us kernel).  v7x (2 TensorCores/chip): keep >=2
    parallel grid steps so both cores get work.  Cap the per-step x block around
    ~1 MiB so large-B runs stay VMEM-friendly.
    """
    try:
        kind = jax.devices()[0].device_kind.lower()
    except Exception:
        kind = ""
    min_steps = 2 if ("v7" in kind and B >= 2) else 1
    cap = max(1, (1 << 20) // (S * E * 4))
    tb = max(1, min(B // min_steps, cap))
    while B % tb:                      # need an integral grid
        tb -= 1
    return tb


def self_attn_pallas(x, params, num_heads):
    """x: [B, S, E] float32. params: dict of pre-transposed f32 weights / biases."""
    B, S, E = x.shape
    H = num_heads
    D = E // H
    assert H * D == E

    scale = 1.0 / math.sqrt(D)

    # Host-side (free) packing: fold the softmax scale into Wq/bq, fuse the QKV
    # weights into one lane-dense [E, 3E] bf16 operand and all four biases into a
    # single [1, 4E] f32 ref (fewer DMAs / BlockSpecs, lane-dense MXU operands).
    wqkv = jnp.concatenate([params["wq_t"] * scale, params["wk_t"], params["wv_t"]],
                           axis=1).astype(jnp.bfloat16)                 # [E, 3E]
    wo = params["wo_t"].astype(jnp.bfloat16)                            # [E, E]
    bias = jnp.concatenate([params["bq"] * scale, params["bk"],
                            params["bv"], params["bo"]], axis=1)        # [1, 4E] f32

    tb = _pick_batch_tile(B, S, E)
    grid = (B // tb,)

    def full(shape):
        return pl.BlockSpec(shape, lambda b, _n=len(shape): (0,) * _n)

    cost = pl.CostEstimate(
        flops=B * (8 * S * E * E + 4 * S * S * E),        # QKV + out proj + QK^T + PV
        transcendentals=B * H * S * S,                    # exp in softmax
        bytes_accessed=2 * B * S * E * 4 + 4 * E * E * 2 + 4 * E * 4,
    )

    return pl.pallas_call(
        functools.partial(_self_attn_kernel, num_heads=H),
        out_shape=jax.ShapeDtypeStruct((B, S, E), x.dtype),
        grid_spec=pltpu.PrefetchScalarGridSpec(
            num_scalar_prefetch=0,
            grid=grid,
            in_specs=[
                pl.BlockSpec((tb, S, E), lambda b: (b, 0, 0)),          # x
                full((E, 3 * E)),                                       # fused Wqkv (bf16)
                full((E, E)),                                           # Wo (bf16)
                full((1, 4 * E)),                                       # packed biases (f32)
            ],
            out_specs=pl.BlockSpec((tb, S, E), lambda b: (b, 0, 0)),
        ),
        compiler_params=pltpu.CompilerParams(
            dimension_semantics=("parallel",),
            vmem_limit_bytes=32 * 1024 * 1024),
        cost_estimate=cost,
    )(x, wqkv, wo, bias)


def _reference(x, params, num_heads):
    """Pure-JAX f32 reference replicating nn.MultiheadAttention forward + residual."""
    B, S, E = x.shape
    D = E // num_heads
    q = x @ params["wq_t"] + params["bq"]
    k = x @ params["wk_t"] + params["bk"]
    v = x @ params["wv_t"] + params["bv"]

    def split(t):  # [B,S,E] -> [B,H,S,D]
        return t.reshape(B, S, num_heads, D).transpose(0, 2, 1, 3)

    qh, kh, vh = split(q), split(k), split(v)
    s = jnp.einsum("bhqd,bhkd->bhqk", qh, kh) / math.sqrt(D)
    p = jax.nn.softmax(s, axis=-1)
    o = jnp.einsum("bhqk,bhkd->bhqd", p, vh)
    o = o.transpose(0, 2, 1, 3).reshape(B, S, E)
    out = o @ params["wo_t"] + params["bo"]
    return out + x


if __name__ == "__main__":
    B, S, E, H = 2, 8, 32, 4     # batch, seq, embed_dim, num_heads

    key = jax.random.PRNGKey(0)
    kx, kq, kk, kv, ko, kbq, kbk, kbv, kbo = jax.random.split(key, 9)

    x = jax.random.normal(kx, (B, S, E), dtype=jnp.float32)

    # Deterministic synthetic parameters (shapes match nn.MultiheadAttention's
    # in_proj [3E, E] split into 3 x [E, E] and out_proj [E, E]); stored
    # pre-transposed so the projections are `x @ W`.
    scale = 0.1
    params = {
        "wq_t": scale * jax.random.normal(kq, (E, E), dtype=jnp.float32),
        "wk_t": scale * jax.random.normal(kk, (E, E), dtype=jnp.float32),
        "wv_t": scale * jax.random.normal(kv, (E, E), dtype=jnp.float32),
        "wo_t": scale * jax.random.normal(ko, (E, E), dtype=jnp.float32),
        "bq":   scale * jax.random.normal(kbq, (1, E), dtype=jnp.float32),
        "bk":   scale * jax.random.normal(kbk, (1, E), dtype=jnp.float32),
        "bv":   scale * jax.random.normal(kbv, (1, E), dtype=jnp.float32),
        "bo":   scale * jax.random.normal(kbo, (1, E), dtype=jnp.float32),
    }

    out = self_attn_pallas(x, params, num_heads=H)
    out = jax.block_until_ready(out)

    ref = _reference(x, params, num_heads=H)
    assert out.shape == (B, S, E)
    # bf16 MXU operands => looser tolerance than pure-f32 (dominant error source).
    assert jnp.allclose(out, ref, atol=5e-2, rtol=5e-2), "mismatch vs reference"

    print("KERNEL_OK")
</pallas_src>

<mosaic_0001>
module attributes {stable_mosaic.version = 11 : i64} {
  func.func @_self_attn_kernel(%arg0: i32, %arg1: memref<2x8x32xf32, #tpu.memory_space<vmem>>, %arg2: memref<32x96xbf16, #tpu.memory_space<vmem>>, %arg3: memref<32x32xbf16, #tpu.memory_space<vmem>>, %arg4: memref<1x128xf32, #tpu.memory_space<vmem>>, %arg5: memref<2x8x32xf32, #tpu.memory_space<vmem>>) attributes {dimension_semantics = [#tpu.dimension_semantics<parallel>], iteration_bounds = array<i64: 1>, scalar_prefetch = 0 : i64, scratch_operands = 0 : i64, tpu.core_type = #tpu.core_type<tc>, window_params = [{transform_indices = @transform_0, window_bounds = array<i64: 2, 8, 32>}, {pipeline_mode = #tpu.pipeline_mode<synchronous>, transform_indices = @transform_1, window_bounds = array<i64: 32, 96>}, {pipeline_mode = #tpu.pipeline_mode<synchronous>, transform_indices = @transform_2, window_bounds = array<i64: 32, 32>}, {pipeline_mode = #tpu.pipeline_mode<synchronous>, transform_indices = @transform_3, window_bounds = array<i64: 1, 128>}, {transform_indices = @transform_4, window_bounds = array<i64: 2, 8, 32>}]} {
    %c0 = arith.constant 0 : index
    %c0_0 = arith.constant 0 : index
    %0 = vector.load %arg2[%c0, %c0_0] : memref<32x96xbf16, #tpu.memory_space<vmem>>, vector<32x96xbf16>
    %c0_1 = arith.constant 0 : index
    %c0_2 = arith.constant 0 : index
    %1 = vector.load %arg3[%c0_1, %c0_2] : memref<32x32xbf16, #tpu.memory_space<vmem>>, vector<32x32xbf16>
    %c0_3 = arith.constant 0 : index
    %c0_4 = arith.constant 0 : index
    %2 = vector.load %arg4[%c0_3, %c0_4] : memref<1x128xf32, #tpu.memory_space<vmem>>, vector<1x128xf32>
    %3 = vector.extract_strided_slice %2 {offsets = [0, 0], sizes = [1, 96], strides = [1, 1]} : vector<1x128xf32> to vector<1x96xf32>
    %4 = vector.extract_strided_slice %2 {offsets = [0, 96], sizes = [1, 32], strides = [1, 1]} : vector<1x128xf32> to vector<1x32xf32>
    %c0_5 = arith.constant 0 : index
    %c0_6 = arith.constant 0 : index
    %c0_7 = arith.constant 0 : index
    %5 = vector.load %arg1[%c0_5, %c0_6, %c0_7] : memref<2x8x32xf32, #tpu.memory_space<vmem>>, vector<1x8x32xf32>
    %6 = vector.shape_cast %5 : vector<1x8x32xf32> to vector<8x32xf32>
    %7 = arith.truncf %6 : vector<8x32xf32> to vector<8x32xbf16>
    %cst = arith.constant dense<0.000000e+00> : vector<8x96xf32>
    %8 = tpu.matmul %7, %0, %cst {dimension_numbers = #tpu.dot_dimension_numbers<[1], [0], [0], [1], [0, 0, 1, 1], [], []>} : vector<8x32xbf16>, vector<32x96xbf16>, vector<8x96xf32> -> vector<8x96xf32>
    %9 = vector.broadcast %3 : vector<1x96xf32> to vector<8x96xf32>
    %10 = arith.addf %8, %9 : vector<8x96xf32>
    %cst_8 = arith.constant 0.000000e+00 : f32
    %11 = vector.broadcast %cst_8 : f32 to vector<8x32xf32>
    %12 = vector.extract_strided_slice %10 {offsets = [0, 0], sizes = [8, 8], strides = [1, 1]} : vector<8x96xf32> to vector<8x8xf32>
    %13 = arith.truncf %12 : vector<8x8xf32> to vector<8x8xbf16>
    %14 = vector.extract_strided_slice %10 {offsets = [0, 32], sizes = [8, 8], strides = [1, 1]} : vector<8x96xf32> to vector<8x8xf32>
    %15 = arith.truncf %14 : vector<8x8xf32> to vector<8x8xbf16>
    %16 = vector.extract_strided_slice %10 {offsets = [0, 64], sizes = [8, 8], strides = [1, 1]} : vector<8x96xf32> to vector<8x8xf32>
    %17 = arith.truncf %16 : vector<8x8xf32> to vector<8x8xbf16>
    %cst_9 = arith.constant dense<0.000000e+00> : vector<8x8xf32>
    %18 = tpu.matmul %13, %15, %cst_9 {dimension_numbers = #tpu.dot_dimension_numbers<[1], [1], [0], [0], [0, 0, 1, 0], [], []>} : vector<8x8xbf16>, vector<8x8xbf16>, vector<8x8xf32> -> vector<8x8xf32>
    %cst_10 = arith.constant dense<0xFF800000> : vector<8xf32>
    %19 = vector.multi_reduction <maximumf>, %18, %cst_10 [1] : vector<8x8xf32> to vector<8xf32>
    %20 = vector.shape_cast %19 : vector<8xf32> to vector<8x1xf32>
    %21 = vector.broadcast %20 : vector<8x1xf32> to vector<8x8xf32>
    %22 = arith.subf %18, %21 : vector<8x8xf32>
    %23 = math.exp %22 : vector<8x8xf32>
    %cst_11 = arith.constant dense<0.000000e+00> : vector<8xf32>
    %24 = vector.multi_reduction <add>, %23, %cst_11 [1] : vector<8x8xf32> to vector<8xf32>
    %25 = vector.shape_cast %24 : vector<8xf32> to vector<8x1xf32>
    %26 = vector.broadcast %25 : vector<8x1xf32> to vector<8x8xf32>
    %27 = arith.divf %23, %26 : vector<8x8xf32>
    %28 = arith.truncf %27 : vector<8x8xf32> to vector<8x8xbf16>
    %cst_12 = arith.constant dense<0.000000e+00> : vector<8x8xf32>
    %29 = tpu.matmul %28, %17, %cst_12 {dimension_numbers = #tpu.dot_dimension_numbers<[1], [0], [0], [1], [0, 0, 1, 1], [], []>} : vector<8x8xbf16>, vector<8x8xbf16>, vector<8x8xf32> -> vector<8x8xf32>
    %30 = arith.truncf %29 : vector<8x8xf32> to vector<8x8xbf16>
    %31 = vector.extract_strided_slice %1 {offsets = [0, 0], sizes = [8, 32], strides = [1, 1]} : vector<32x32xbf16> to vector<8x32xbf16>
    %cst_13 = arith.constant dense<0.000000e+00> : vector<8x32xf32>
    %32 = tpu.matmul %30, %31, %cst_13 {dimension_numbers = #tpu.dot_dimension_numbers<[1], [0], [0], [1], [0, 0, 1, 1], [], []>} : vector<8x8xbf16>, vector<8x32xbf16>, vector<8x32xf32> -> vector<8x32xf32>
    %33 = arith.addf %11, %32 : vector<8x32xf32>
    %34 = vector.extract_strided_slice %10 {offsets = [0, 8], sizes = [8, 8], strides = [1, 1]} : vector<8x96xf32> to vector<8x8xf32>
    %35 = arith.truncf %34 : vector<8x8xf32> to vector<8x8xbf16>
    %36 = vector.extract_strided_slice %10 {offsets = [0, 40], sizes = [8, 8], strides = [1, 1]} : vector<8x96xf32> to vector<8x8xf32>
    %37 = arith.truncf %36 : vector<8x8xf32> to vector<8x8xbf16>
    %38 = vector.extract_strided_slice %10 {offsets = [0, 72], sizes = [8, 8], strides = [1, 1]} : vector<8x96xf32> to vector<8x8xf32>
    %39 = arith.truncf %38 : vector<8x8xf32> to vector<8x8xbf16>
    %cst_14 = arith.constant dense<0.000000e+00> : vector<8x8xf32>
    %40 = tpu.matmul %35, %37, %cst_14 {dimension_numbers = #tpu.dot_dimension_numbers<[1], [1], [0], [0], [0, 0, 1, 0], [], []>} : vector<8x8xbf16>, vector<8x8xbf16>, vector<8x8xf32> -> vector<8x8xf32>
    %cst_15 = arith.constant dense<0xFF800000> : vector<8xf32>
    %41 = vector.multi_reduction <maximumf>, %40, %cst_15 [1] : vector<8x8xf32> to vector<8xf32>
    %42 = vector.shape_cast %41 : vector<8xf32> to vector<8x1xf32>
    %43 = vector.broadcast %42 : vector<8x1xf32> to vector<8x8xf32>
    %44 = arith.subf %40, %43 : vector<8x8xf32>
    %45 = math.exp %44 : vector<8x8xf32>
    %cst_16 = arith.constant dense<0.000000e+00> : vector<8xf32>
    %46 = vector.multi_reduction <add>, %45, %cst_16 [1] : vector<8x8xf32> to vector<8xf32>
    %47 = vector.shape_cast %46 : vector<8xf32> to vector<8x1xf32>
    %48 = vector.broadcast %47 : vector<8x1xf32> to vector<8x8xf32>
    %49 = arith.divf %45, %48 : vector<8x8xf32>
    %50 = arith.truncf %49 : vector<8x8xf32> to vector<8x8xbf16>
    %cst_17 = arith.constant dense<0.000000e+00> : vector<8x8xf32>
    %51 = tpu.matmul %50, %39, %cst_17 {dimension_numbers = #tpu.dot_dimension_numbers<[1], [0], [0], [1], [0, 0, 1, 1], [], []>} : vector<8x8xbf16>, vector<8x8xbf16>, vector<8x8xf32> -> vector<8x8xf32>
    %52 = arith.truncf %51 : vector<8x8xf32> to vector<8x8xbf16>
    %53 = vector.extract_strided_slice %1 {offsets = [8, 0], sizes = [8, 32], strides = [1, 1]} : vector<32x32xbf16> to vector<8x32xbf16>
    %cst_18 = arith.constant dense<0.000000e+00> : vector<8x32xf32>
    %54 = tpu.matmul %52, %53, %cst_18 {dimension_numbers = #tpu.dot_dimension_numbers<[1], [0], [0], [1], [0, 0, 1, 1], [], []>} : vector<8x8xbf16>, vector<8x32xbf16>, vector<8x32xf32> -> vector<8x32xf32>
    %55 = arith.addf %33, %54 : vector<8x32xf32>
    %56 = vector.extract_strided_slice %10 {offsets = [0, 16], sizes = [8, 8], strides = [1, 1]} : vector<8x96xf32> to vector<8x8xf32>
    %57 = arith.truncf %56 : vector<8x8xf32> to vector<8x8xbf16>
    %58 = vector.extract_strided_slice %10 {offsets = [0, 48], sizes = [8, 8], strides = [1, 1]} : vector<8x96xf32> to vector<8x8xf32>
    %59 = arith.truncf %58 : vector<8x8xf32> to vector<8x8xbf16>
    %60 = vector.extract_strided_slice %10 {offsets = [0, 80], sizes = [8, 8], strides = [1, 1]} : vector<8x96xf32> to vector<8x8xf32>
    %61 = arith.truncf %60 : vector<8x8xf32> to vector<8x8xbf16>
    %cst_19 = arith.constant dense<0.000000e+00> : vector<8x8xf32>
    %62 = tpu.matmul %57, %59, %cst_19 {dimension_numbers = #tpu.dot_dimension_numbers<[1], [1], [0], [0], [0, 0, 1, 0], [], []>} : vector<8x8xbf16>, vector<8x8xbf16>, vector<8x8xf32> -> vector<8x8xf32>
    %cst_20 = arith.constant dense<0xFF800000> : vector<8xf32>
    %63 = vector.multi_reduction <maximumf>, %62, %cst_20 [1] : vector<8x8xf32> to vector<8xf32>
    %64 = vector.shape_cast %63 : vector<8xf32> to vector<8x1xf32>
    %65 = vector.broadcast %64 : vector<8x1xf32> to vector<8x8xf32>
    %66 = arith.subf %62, %65 : vector<8x8xf32>
    %67 = math.exp %66 : vector<8x8xf32>
    %cst_21 = arith.constant dense<0.000000e+00> : vector<8xf32>
    %68 = vector.multi_reduction <add>, %67, %cst_21 [1] : vector<8x8xf32> to vector<8xf32>
    %69 = vector.shape_cast %68 : vector<8xf32> to vector<8x1xf32>
    %70 = vector.broadcast %69 : vector<8x1xf32> to vector<8x8xf32>
    %71 = arith.divf %67, %70 : vector<8x8xf32>
    %72 = arith.truncf %71 : vector<8x8xf32> to vector<8x8xbf16>
    %cst_22 = arith.constant dense<0.000000e+00> : vector<8x8xf32>
    %73 = tpu.matmul %72, %61, %cst_22 {dimension_numbers = #tpu.dot_dimension_numbers<[1], [0], [0], [1], [0, 0, 1, 1], [], []>} : vector<8x8xbf16>, vector<8x8xbf16>, vector<8x8xf32> -> vector<8x8xf32>
    %74 = arith.truncf %73 : vector<8x8xf32> to vector<8x8xbf16>
    %75 = vector.extract_strided_slice %1 {offsets = [16, 0], sizes = [8, 32], strides = [1, 1]} : vector<32x32xbf16> to vector<8x32xbf16>
    %cst_23 = arith.constant dense<0.000000e+00> : vector<8x32xf32>
    %76 = tpu.matmul %74, %75, %cst_23 {dimension_numbers = #tpu.dot_dimension_numbers<[1], [0], [0], [1], [0, 0, 1, 1], [], []>} : vector<8x8xbf16>, vector<8x32xbf16>, vector<8x32xf32> -> vector<8x32xf32>
    %77 = arith.addf %55, %76 : vector<8x32xf32>
    %78 = vector.extract_strided_slice %10 {offsets = [0, 24], sizes = [8, 8], strides = [1, 1]} : vector<8x96xf32> to vector<8x8xf32>
    %79 = arith.truncf %78 : vector<8x8xf32> to vector<8x8xbf16>
    %80 = vector.extract_strided_slice %10 {offsets = [0, 56], sizes = [8, 8], strides = [1, 1]} : vector<8x96xf32> to vector<8x8xf32>
    %81 = arith.truncf %80 : vector<8x8xf32> to vector<8x8xbf16>
    %82 = vector.extract_strided_slice %10 {offsets = [0, 88], sizes = [8, 8], strides = [1, 1]} : vector<8x96xf32> to vector<8x8xf32>
    %83 = arith.truncf %82 : vector<8x8xf32> to vector<8x8xbf16>
    %cst_24 = arith.constant dense<0.000000e+00> : vector<8x8xf32>
    %84 = tpu.matmul %79, %81, %cst_24 {dimension_numbers = #tpu.dot_dimension_numbers<[1], [1], [0], [0], [0, 0, 1, 0], [], []>} : vector<8x8xbf16>, vector<8x8xbf16>, vector<8x8xf32> -> vector<8x8xf32>
    %cst_25 = arith.constant dense<0xFF800000> : vector<8xf32>
    %85 = vector.multi_reduction <maximumf>, %84, %cst_25 [1] : vector<8x8xf32> to vector<8xf32>
    %86 = vector.shape_cast %85 : vector<8xf32> to vector<8x1xf32>
    %87 = vector.broadcast %86 : vector<8x1xf32> to vector<8x8xf32>
    %88 = arith.subf %84, %87 : vector<8x8xf32>
    %89 = math.exp %88 : vector<8x8xf32>
    %cst_26 = arith.constant dense<0.000000e+00> : vector<8xf32>
    %90 = vector.multi_reduction <add>, %89, %cst_26 [1] : vector<8x8xf32> to vector<8xf32>
    %91 = vector.shape_cast %90 : vector<8xf32> to vector<8x1xf32>
    %92 = vector.broadcast %91 : vector<8x1xf32> to vector<8x8xf32>
    %93 = arith.divf %89, %92 : vector<8x8xf32>
    %94 = arith.truncf %93 : vector<8x8xf32> to vector<8x8xbf16>
    %cst_27 = arith.constant dense<0.000000e+00> : vector<8x8xf32>
    %95 = tpu.matmul %94, %83, %cst_27 {dimension_numbers = #tpu.dot_dimension_numbers<[1], [0], [0], [1], [0, 0, 1, 1], [], []>} : vector<8x8xbf16>, vector<8x8xbf16>, vector<8x8xf32> -> vector<8x8xf32>
    %96 = arith.truncf %95 : vector<8x8xf32> to vector<8x8xbf16>
    %97 = vector.extract_strided_slice %1 {offsets = [24, 0], sizes = [8, 32], strides = [1, 1]} : vector<32x32xbf16> to vector<8x32xbf16>
    %cst_28 = arith.constant dense<0.000000e+00> : vector<8x32xf32>
    %98 = tpu.matmul %96, %97, %cst_28 {dimension_numbers = #tpu.dot_dimension_numbers<[1], [0], [0], [1], [0, 0, 1, 1], [], []>} : vector<8x8xbf16>, vector<8x32xbf16>, vector<8x32xf32> -> vector<8x32xf32>
    %99 = arith.addf %77, %98 : vector<8x32xf32>
    %100 = vector.broadcast %4 : vector<1x32xf32> to vector<8x32xf32>
    %101 = arith.addf %99, %100 : vector<8x32xf32>
    %102 = arith.addf %101, %6 : vector<8x32xf32>
    %c0_29 = arith.constant 0 : index
    %c0_30 = arith.constant 0 : index
    %c0_31 = arith.constant 0 : index
    %103 = vector.load %arg5[%c0_29, %c0_30, %c0_31] : memref<2x8x32xf32, #tpu.memory_space<vmem>>, vector<1x8x32xf32>
    %104 = vector.shape_cast %103 : vector<1x8x32xf32> to vector<8x32xf32>
    %105 = vector.shape_cast %102 : vector<8x32xf32> to vector<1x8x32xf32>
    tpu.vector_store %arg5[%c0_29, %c0_30, %c0_31], %105 {strides = array<i32>} : memref<2x8x32xf32, #tpu.memory_space<vmem>>, vector<1x8x32xf32>,
    %c1 = arith.constant 1 : index
    %c0_32 = arith.constant 0 : index
    %c0_33 = arith.constant 0 : index
    %106 = vector.load %arg1[%c1, %c0_32, %c0_33] : memref<2x8x32xf32, #tpu.memory_space<vmem>>, vector<1x8x32xf32>
    %107 = vector.shape_cast %106 : vector<1x8x32xf32> to vector<8x32xf32>
    %108 = arith.truncf %107 : vector<8x32xf32> to vector<8x32xbf16>
    %cst_34 = arith.constant dense<0.000000e+00> : vector<8x96xf32>
    %109 = tpu.matmul %108, %0, %cst_34 {dimension_numbers = #tpu.dot_dimension_numbers<[1], [0], [0], [1], [0, 0, 1, 1], [], []>} : vector<8x32xbf16>, vector<32x96xbf16>, vector<8x96xf32> -> vector<8x96xf32>
    %110 = vector.broadcast %3 : vector<1x96xf32> to vector<8x96xf32>
    %111 = arith.addf %109, %110 : vector<8x96xf32>
    %cst_35 = arith.constant 0.000000e+00 : f32
    %112 = vector.broadcast %cst_35 : f32 to vector<8x32xf32>
    %113 = vector.extract_strided_slice %111 {offsets = [0, 0], sizes = [8, 8], strides = [1, 1]} : vector<8x96xf32> to vector<8x8xf32>
    %114 = arith.truncf %113 : vector<8x8xf32> to vector<8x8xbf16>
    %115 = vector.extract_strided_slice %111 {offsets = [0, 32], sizes = [8, 8], strides = [1, 1]} : vector<8x96xf32> to vector<8x8xf32>
    %116 = arith.truncf %115 : vector<8x8xf32> to vector<8x8xbf16>
    %117 = vector.extract_strided_slice %111 {offsets = [0, 64], sizes = [8, 8], strides = [1, 1]} : vector<8x96xf32> to vector<8x8xf32>
    %118 = arith.truncf %117 : vector<8x8xf32> to vector<8x8xbf16>
    %cst_36 = arith.constant dense<0.000000e+00> : vector<8x8xf32>
    %119 = tpu.matmul %114, %116, %cst_36 {dimension_numbers = #tpu.dot_dimension_numbers<[1], [1], [0], [0], [0, 0, 1, 0], [], []>} : vector<8x8xbf16>, vector<8x8xbf16>, vector<8x8xf32> -> vector<8x8xf32>
    %cst_37 = arith.constant dense<0xFF800000> : vector<8xf32>
    %120 = vector.multi_reduction <maximumf>, %119, %cst_37 [1] : vector<8x8xf32> to vector<8xf32>
    %121 = vector.shape_cast %120 : vector<8xf32> to vector<8x1xf32>
    %122 = vector.broadcast %121 : vector<8x1xf32> to vector<8x8xf32>
    %123 = arith.subf %119, %122 : vector<8x8xf32>
    %124 = math.exp %123 : vector<8x8xf32>
    %cst_38 = arith.constant dense<0.000000e+00> : vector<8xf32>
    %125 = vector.multi_reduction <add>, %124, %cst_38 [1] : vector<8x8xf32> to vector<8xf32>
    %126 = vector.shape_cast %125 : vector<8xf32> to vector<8x1xf32>
    %127 = vector.broadcast %126 : vector<8x1xf32> to vector<8x8xf32>
    %128 = arith.divf %124, %127 : vector<8x8xf32>
    %129 = arith.truncf %128 : vector<8x8xf32> to vector<8x8xbf16>
    %cst_39 = arith.constant dense<0.000000e+00> : vector<8x8xf32>
    %130 = tpu.matmul %129, %118, %cst_39 {dimension_numbers = #tpu.dot_dimension_numbers<[1], [0], [0], [1], [0, 0, 1, 1], [], []>} : vector<8x8xbf16>, vector<8x8xbf16>, vector<8x8xf32> -> vector<8x8xf32>
    %131 = arith.truncf %130 : vector<8x8xf32> to vector<8x8xbf16>
    %132 = vector.extract_strided_slice %1 {offsets = [0, 0], sizes = [8, 32], strides = [1, 1]} : vector<32x32xbf16> to vector<8x32xbf16>
    %cst_40 = arith.constant dense<0.000000e+00> : vector<8x32xf32>
    %133 = tpu.matmul %131, %132, %cst_40 {dimension_numbers = #tpu.dot_dimension_numbers<[1], [0], [0], [1], [0, 0, 1, 1], [], []>} : vector<8x8xbf16>, vector<8x32xbf16>, vector<8x32xf32> -> vector<8x32xf32>
    %134 = arith.addf %112, %133 : vector<8x32xf32>
    %135 = vector.extract_strided_slice %111 {offsets = [0, 8], sizes = [8, 8], strides = [1, 1]} : vector<8x96xf32> to vector<8x8xf32>
    %136 = arith.truncf %135 : vector<8x8xf32> to vector<8x8xbf16>
    %137 = vector.extract_strided_slice %111 {offsets = [0, 40], sizes = [8, 8], strides = [1, 1]} : vector<8x96xf32> to vector<8x8xf32>
    %138 = arith.truncf %137 : vector<8x8xf32> to vector<8x8xbf16>
    %139 = vector.extract_strided_slice %111 {offsets = [0, 72], sizes = [8, 8], strides = [1, 1]} : vector<8x96xf32> to vector<8x8xf32>
    %140 = arith.truncf %139 : vector<8x8xf32> to vector<8x8xbf16>
    %cst_41 = arith.constant dense<0.000000e+00> : vector<8x8xf32>
    %141 = tpu.matmul %136, %138, %cst_41 {dimension_numbers = #tpu.dot_dimension_numbers<[1], [1], [0], [0], [0, 0, 1, 0], [], []>} : vector<8x8xbf16>, vector<8x8xbf16>, vector<8x8xf32> -> vector<8x8xf32>
    %cst_42 = arith.constant dense<0xFF800000> : vector<8xf32>
    %142 = vector.multi_reduction <maximumf>, %141, %cst_42 [1] : vector<8x8xf32> to vector<8xf32>
    %143 = vector.shape_cast %142 : vector<8xf32> to vector<8x1xf32>
    %144 = vector.broadcast %143 : vector<8x1xf32> to vector<8x8xf32>
    %145 = arith.subf %141, %144 : vector<8x8xf32>
    %146 = math.exp %145 : vector<8x8xf32>
    %cst_43 = arith.constant dense<0.000000e+00> : vector<8xf32>
    %147 = vector.multi_reduction <add>, %146, %cst_43 [1] : vector<8x8xf32> to vector<8xf32>
    %148 = vector.shape_cast %147 : vector<8xf32> to vector<8x1xf32>
    %149 = vector.broadcast %148 : vector<8x1xf32> to vector<8x8xf32>
    %150 = arith.divf %146, %149 : vector<8x8xf32>
    %151 = arith.truncf %150 : vector<8x8xf32> to vector<8x8xbf16>
    %cst_44 = arith.constant dense<0.000000e+00> : vector<8x8xf32>
    %152 = tpu.matmul %151, %140, %cst_44 {dimension_numbers = #tpu.dot_dimension_numbers<[1], [0], [0], [1], [0, 0, 1, 1], [], []>} : vector<8x8xbf16>, vector<8x8xbf16>, vector<8x8xf32> -> vector<8x8xf32>
    %153 = arith.truncf %152 : vector<8x8xf32> to vector<8x8xbf16>
    %154 = vector.extract_strided_slice %1 {offsets = [8, 0], sizes = [8, 32], strides = [1, 1]} : vector<32x32xbf16> to vector<8x32xbf16>
    %cst_45 = arith.constant dense<0.000000e+00> : vector<8x32xf32>
    %155 = tpu.matmul %153, %154, %cst_45 {dimension_numbers = #tpu.dot_dimension_numbers<[1], [0], [0], [1], [0, 0, 1, 1], [], []>} : vector<8x8xbf16>, vector<8x32xbf16>, vector<8x32xf32> -> vector<8x32xf32>
    %156 = arith.addf %134, %155 : vector<8x32xf32>
    %157 = vector.extract_strided_slice %111 {offsets = [0, 16], sizes = [8, 8], strides = [1, 1]} : vector<8x96xf32> to vector<8x8xf32>
    %158 = arith.truncf %157 : vector<8x8xf32> to vector<8x8xbf16>
    %159 = vector.extract_strided_slice %111 {offsets = [0, 48], sizes = [8, 8], strides = [1, 1]} : vector<8x96xf32> to vector<8x8xf32>
    %160 = arith.truncf %159 : vector<8x8xf32> to vector<8x8xbf16>
    %161 = vector.extract_strided_slice %111 {offsets = [0, 80], sizes = [8, 8], strides = [1, 1]} : vector<8x96xf32> to vector<8x8xf32>
    %162 = arith.truncf %161 : vector<8x8xf32> to vector<8x8xbf16>
    %cst_46 = arith.constant dense<0.000000e+00> : vector<8x8xf32>
    %163 = tpu.matmul %158, %160, %cst_46 {dimension_numbers = #tpu.dot_dimension_numbers<[1], [1], [0], [0], [0, 0, 1, 0], [], []>} : vector<8x8xbf16>, vector<8x8xbf16>, vector<8x8xf32> -> vector<8x8xf32>
    %cst_47 = arith.constant dense<0xFF800000> : vector<8xf32>
    %164 = vector.multi_reduction <maximumf>, %163, %cst_47 [1] : vector<8x8xf32> to vector<8xf32>
    %165 = vector.shape_cast %164 : vector<8xf32> to vector<8x1xf32>
    %166 = vector.broadcast %165 : vector<8x1xf32> to vector<8x8xf32>
    %167 = arith.subf %163, %166 : vector<8x8xf32>
    %168 = math.exp %167 : vector<8x8xf32>
    %cst_48 = arith.constant dense<0.000000e+00> : vector<8xf32>
    %169 = vector.multi_reduction <add>, %168, %cst_48 [1] : vector<8x8xf32> to vector<8xf32>
    %170 = vector.shape_cast %169 : vector<8xf32> to vector<8x1xf32>
    %171 = vector.broadcast %170 : vector<8x1xf32> to vector<8x8xf32>
    %172 = arith.divf %168, %171 : vector<8x8xf32>
    %173 = arith.truncf %172 : vector<8x8xf32> to vector<8x8xbf16>
    %cst_49 = arith.constant dense<0.000000e+00> : vector<8x8xf32>
    %174 = tpu.matmul %173, %162, %cst_49 {dimension_numbers = #tpu.dot_dimension_numbers<[1], [0], [0], [1], [0, 0, 1, 1], [], []>} : vector<8x8xbf16>, vector<8x8xbf16>, vector<8x8xf32> -> vector<8x8xf32>
    %175 = arith.truncf %174 : vector<8x8xf32> to vector<8x8xbf16>
    %176 = vector.extract_strided_slice %1 {offsets = [16, 0], sizes = [8, 32], strides = [1, 1]} : vector<32x32xbf16> to vector<8x32xbf16>
    %cst_50 = arith.constant dense<0.000000e+00> : vector<8x32xf32>
    %177 = tpu.matmul %175, %176, %cst_50 {dimension_numbers = #tpu.dot_dimension_numbers<[1], [0], [0], [1], [0, 0, 1, 1], [], []>} : vector<8x8xbf16>, vector<8x32xbf16>, vector<8x32xf32> -> vector<8x32xf32>
    %178 = arith.addf %156, %177 : vector<8x32xf32>
    %179 = vector.extract_strided_slice %111 {offsets = [0, 24], sizes = [8, 8], strides = [1, 1]} : vector<8x96xf32> to vector<8x8xf32>
    %180 = arith.truncf %179 : vector<8x8xf32> to vector<8x8xbf16>
    %181 = vector.extract_strided_slice %111 {offsets = [0, 56], sizes = [8, 8], strides = [1, 1]} : vector<8x96xf32> to vector<8x8xf32>
    %182 = arith.truncf %181 : vector<8x8xf32> to vector<8x8xbf16>
    %183 = vector.extract_strided_slice %111 {offsets = [0, 88], sizes = [8, 8], strides = [1, 1]} : vector<8x96xf32> to vector<8x8xf32>
    %184 = arith.truncf %183 : vector<8x8xf32> to vector<8x8xbf16>
    %cst_51 = arith.constant dense<0.000000e+00> : vector<8x8xf32>
    %185 = tpu.matmul %180, %182, %cst_51 {dimension_numbers = #tpu.dot_dimension_numbers<[1], [1], [0], [0], [0, 0, 1, 0], [], []>} : vector<8x8xbf16>, vector<8x8xbf16>, vector<8x8xf32> -> vector<8x8xf32>
    %cst_52 = arith.constant dense<0xFF800000> : vector<8xf32>
    %186 = vector.multi_reduction <maximumf>, %185, %cst_52 [1] : vector<8x8xf32> to vector<8xf32>
    %187 = vector.shape_cast %186 : vector<8xf32> to vector<8x1xf32>
    %188 = vector.broadcast %187 : vector<8x1xf32> to vector<8x8xf32>
    %189 = arith.subf %185, %188 : vector<8x8xf32>
    %190 = math.exp %189 : vector<8x8xf32>
    %cst_53 = arith.constant dense<0.000000e+00> : vector<8xf32>
    %191 = vector.multi_reduction <add>, %190, %cst_53 [1] : vector<8x8xf32> to vector<8xf32>
    %192 = vector.shape_cast %191 : vector<8xf32> to vector<8x1xf32>
    %193 = vector.broadcast %192 : vector<8x1xf32> to vector<8x8xf32>
    %194 = arith.divf %190, %193 : vector<8x8xf32>
    %195 = arith.truncf %194 : vector<8x8xf32> to vector<8x8xbf16>
    %cst_54 = arith.constant dense<0.000000e+00> : vector<8x8xf32>
    %196 = tpu.matmul %195, %184, %cst_54 {dimension_numbers = #tpu.dot_dimension_numbers<[1], [0], [0], [1], [0, 0, 1, 1], [], []>} : vector<8x8xbf16>, vector<8x8xbf16>, vector<8x8xf32> -> vector<8x8xf32>
    %197 = arith.truncf %196 : vector<8x8xf32> to vector<8x8xbf16>
    %198 = vector.extract_strided_slice %1 {offsets = [24, 0], sizes = [8, 32], strides = [1, 1]} : vector<32x32xbf16> to vector<8x32xbf16>
    %cst_55 = arith.constant dense<0.000000e+00> : vector<8x32xf32>
    %199 = tpu.matmul %197, %198, %cst_55 {dimension_numbers = #tpu.dot_dimension_numbers<[1], [0], [0], [1], [0, 0, 1, 1], [], []>} : vector<8x8xbf16>, vector<8x32xbf16>, vector<8x32xf32> -> vector<8x32xf32>
    %200 = arith.addf %178, %199 : vector<8x32xf32>
    %201 = vector.broadcast %4 : vector<1x32xf32> to vector<8x32xf32>
    %202 = arith.addf %200, %201 : vector<8x32xf32>
    %203 = arith.addf %202, %107 : vector<8x32xf32>
    %c1_56 = arith.constant 1 : index
    %c0_57 = arith.constant 0 : index
    %c0_58 = arith.constant 0 : index
    %204 = vector.load %arg5[%c1_56, %c0_57, %c0_58] : memref<2x8x32xf32, #tpu.memory_space<vmem>>, vector<1x8x32xf32>
    %205 = vector.shape_cast %204 : vector<1x8x32xf32> to vector<8x32xf32>
    %206 = vector.shape_cast %203 : vector<8x32xf32> to vector<1x8x32xf32>
    tpu.vector_store %arg5[%c1_56, %c0_57, %c0_58], %206 {strides = array<i32>} : memref<2x8x32xf32, #tpu.memory_space<vmem>>, vector<1x8x32xf32>,
    return
  }
  func.func @transform_0(%arg0: i32) -> (i32, i32, i32) {
    %c0_i32 = arith.constant 0 : i32
    %c0_i32_0 = arith.constant 0 : i32
    %c0_i32_1 = arith.constant 0 : i32
    return %arg0, %c0_i32, %c0_i32_0 : i32, i32, i32
  }
  func.func @transform_1(%arg0: i32) -> (i32, i32) {
    %c0_i32 = arith.constant 0 : i32
    %c0_i32_0 = arith.constant 0 : i32
    %c0_i32_1 = arith.constant 0 : i32
    return %c0_i32, %c0_i32_0 : i32, i32
  }
  func.func @transform_2(%arg0: i32) -> (i32, i32) {
    %c0_i32 = arith.constant 0 : i32
    %c0_i32_0 = arith.constant 0 : i32
    %c0_i32_1 = arith.constant 0 : i32
    return %c0_i32, %c0_i32_0 : i32, i32
  }
  func.func @transform_3(%arg0: i32) -> (i32, i32) {
    %c0_i32 = arith.constant 0 : i32
    %c0_i32_0 = arith.constant 0 : i32
    %c0_i32_1 = arith.constant 0 : i32
    return %c0_i32, %c0_i32_0 : i32, i32
  }
  func.func @transform_4(%arg0: i32) -> (i32, i32, i32) {
    %c0_i32 = arith.constant 0 : i32
    %c0_i32_0 = arith.constant 0 : i32
    %c0_i32_1 = arith.constant 0 : i32
    return %arg0, %c0_i32, %c0_i32_0 : i32, i32, i32
  }
}

</mosaic_0001>

<llo_original>
// kernel: tpu_custom_call.1
$region0: #{tpu_custom_call.1}
  #allocation0 [shape = 'u32[]', space=smem, size = 0x4, offset = 0x4, fixed_abs, tag = 'smem constant byte address 0x4 - core index']
  #allocation1 [shape = 'u32[144,128]{1,0:T(1,128)}', space=vmem, size = 0x12000, scoped, tag = 'internal scratch']
  %s0 = inlined_call_operand.hbm [shape: f32[2,8,32], index: 0, kind: input, shape index: {}]
  %s1 = inlined_call_operand.hbm [shape: bf16[32,96], index: 1, kind: input, shape index: {}]
  %s2 = inlined_call_operand.hbm [shape: bf16[32,32], index: 2, kind: input, shape index: {}]
  %s3 = inlined_call_operand.vmem [shape: f32[1,128], index: 3, kind: input, shape index: {}]
  %s4 = inlined_call_operand.hbm [shape: f32[2,8,32], index: 4, kind: output, shape index: {}]
  %s5 = sld [smem:[#allocation0]]
  $region38: #{tpu_custom_call.1} parent=0
    _
  %s7 = ssub.s32 1, %s5
  %s8 = scalar_select 0, %s7, %s5
  $region1: #{tpu_custom_call.1} parent=0
    #allocation2 [shape = 'u8[8192]{0}', space=vmem, size = 0x2000, scoped, tag = 'input window, operand 0, single buffered']
    #allocation3 [shape = 's32[1]{0}', space=sflag, size = 0x4, scoped, tag = 'scoped memory for tpu_custom_call.1']
    #allocation4 [shape = 's32[1]{0}', space=sflag, size = 0x4, scoped, tag = 'scoped memory for tpu_custom_call.1']
    #allocation5 [shape = 'u8[8192]{0}', space=vmem, size = 0x2000, scoped, tag = 'input window, operand 1, single buffered']
    #allocation6 [shape = 's32[1]{0}', space=sflag, size = 0x4, scoped, tag = 'scoped memory for tpu_custom_call.1']
    #allocation7 [shape = 'u8[8192]{0}', space=vmem, size = 0x2000, scoped, tag = 'input window, operand 2, single buffered']
    #allocation8 [shape = 'u8[8192]{0}', space=vmem, size = 0x2000, scoped, tag = 'output window, operand 0, single buffered']
    %9 = vsyncpa [#allocation3], 0
    %10 = vsyncpa [#allocation6], 0
    %11 = vsyncpa [#allocation4], 0
    // Predicated region
    $region2: #{tpu_custom_call.1} parent=1 // pred_check
      _
    $region3: #{tpu_custom_call.1} parent=1 // pred_check_branch
      %13 = sbr.rel (0) target = $region5
    $region4: #{tpu_custom_call.1} parent=1 // pred_region
      %s15 = ssub.s32 256, 256
      %16 = vsyncadd [#allocation3], %s15
      %s17 = sshll.u32 [#allocation2], 4
      %s18 = int_to_ptr.vmem [resolvable:$true] %s17
      %23 = dma.hbm_to_vmem [thread:$0]  %s0, 256, %s18, [#allocation3], 128, 128, 8
    $region5: #{tpu_custom_call.1} parent=1 // pred_fallthru
      _
    // Predicated region
    $region6: #{tpu_custom_call.1} parent=1 // pred_check
      _
    $region7: #{tpu_custom_call.1} parent=1 // pred_check_branch
      %25 = sbr.rel (0) target = $region9
    $region8: #{tpu_custom_call.1} parent=1 // pred_region
      %s27 = ssub.s32 256, 256
      %28 = vsyncadd [#allocation6], %s27
      %s29 = sshll.u32 [#allocation5], 4
      %s30 = int_to_ptr.vmem [resolvable:$true] %s29
      %35 = dma.hbm_to_vmem [thread:$0]  %s1, 256, %s30, [#allocation6], 64, 64, 4
    $region9: #{tpu_custom_call.1} parent=1 // pred_fallthru
      _
    // Predicated region
    $region10: #{tpu_custom_call.1} parent=1 // pred_check
      _
    $region11: #{tpu_custom_call.1} parent=1 // pred_check_branch
      %37 = sbr.rel (0) target = $region13
    $region12: #{tpu_custom_call.1} parent=1 // pred_region
      %s39 = ssub.s32 256, 256
      %40 = vsyncadd [#allocation6], %s39
      %s41 = sshll.u32 [#allocation7], 4
      %s42 = int_to_ptr.vmem [resolvable:$true] %s41
      %47 = dma.hbm_to_vmem [thread:$0]  %s2, 256, %s42, [#allocation6], 64, 64, 4
    $region13: #{tpu_custom_call.1} parent=1 // pred_fallthru
      _
    // Predicated region
    $region14: #{tpu_custom_call.1} parent=1 // pred_check
      _
    $region15: #{tpu_custom_call.1} parent=1 // pred_check_branch
      %49 = sbr.rel (0) target = $region17
    $region16: #{tpu_custom_call.1} parent=1 // pred_region
      _
    $region17: #{tpu_custom_call.1} parent=1 // pred_fallthru
      _
    // Predicated region
    $region18: #{tpu_custom_call.1} parent=1 // pred_check
      _
    $region19: #{tpu_custom_call.1} parent=1 // pred_check_branch
      %51 = sbr.rel (0) target = $region21
    $region20: #{tpu_custom_call.1} parent=1 // pred_region
      %52 = dma.done [#allocation3], 256
    $region21: #{tpu_custom_call.1} parent=1 // pred_fallthru
      _
    // Predicated region
    $region22: #{tpu_custom_call.1} parent=1 // pred_check
      _
    $region23: #{tpu_custom_call.1} parent=1 // pred_check_branch
      %54 = sbr.rel (0) target = $region25
    $region24: #{tpu_custom_call.1} parent=1 // pred_region
      %55 = dma.done [#allocation6], 256
    $region25: #{tpu_custom_call.1} parent=1 // pred_fallthru
      _
    // Predicated region
    $region26: #{tpu_custom_call.1} parent=1 // pred_check
      _
    $region27: #{tpu_custom_call.1} parent=1 // pred_check_branch
      %57 = sbr.rel (0) target = $region29
    $region28: #{tpu_custom_call.1} parent=1 // pred_region
      %58 = dma.done [#allocation6], 256
    $region29: #{tpu_custom_call.1} parent=1 // pred_fallthru
      _
    %v60 = vld [vmem:[#allocation5] sm:$0xf]
    %v61 = vld [vmem:[#allocation5 + $0x4] sm:$0xf]
    %v62 = vld [vmem:[#allocation5 + $0x8] sm:$0xf]
    %v63 = vld [vmem:[#allocation5 + $0xc] sm:$0xf]
    %v64 = vld [vmem:[#allocation7] sm:$0xf]
    %v65 = vld [vmem:[#allocation7 + $0x4] sm:$0xf]
    %v66 = vld [vmem:[#allocation7 + $0x8] sm:$0xf]
    %v67 = vld [vmem:[#allocation7 + $0xc] sm:$0xf]
    %v68 = vld [vmem:[%s3] sm:$0x1]
    %v69 = vld [vmem:[#allocation2] sm:$0xff]
    %v70 = vpack.c.bf16 %v69, %v69
    %v72 = vlaneseq
    %v73 = vshrl.u32 %v72, 7
    %v74 = vsub.s32 0, %v73
    %v75 = vrot.slane %v68, %v74
    %v81 = vunpack.c.l.b16 %v60
    %v82 = vunpack.c.l.b16 %v61
    %v83 = vunpack.c.l.b16 %v62
    %v84 = vunpack.c.l.b16 %v63
    %v85 = vpack.c.b16 %v82, %v81
    %v86 = vpack.c.b16 %v84, %v83
    %vm89 = vcmask 261120
    %v91 = vsel %vm89, %v70, 0
    %93 = vmatprep.subr.bf16.mxu0 0
    %94 = vmatpush1.bf16.msra.mxu0 %v85
    %95 = vmatprep.subr.bf16.mxu0 0
    %96 = vmatpush1.bf16.msra.mxu0 %v86
    %97 = vmatprep.subr.bf16.mxu0 0
    %98 = vmatpush1.bf16.msra.mxu0 0
    %99 = vmatprep.subr.bf16.mxu0 0
    %100 = vmatpush1.bf16.msra.mxu0 0
    %101 = vmatprep.subr.bf16.mxu0 0
    %102 = vmatpush1.bf16.msra.mxu0 0
    %103 = vmatprep.subr.bf16.mxu0 0
    %104 = vmatpush1.bf16.msra.mxu0 0
    %105 = vmatprep.subr.bf16.mxu0 0
    %106 = vmatpush1.bf16.msra.mxu0 0
    %107 = vmatprep.subr.bf16.mxu0 0
    %108 = vmatpush1.bf16.msra.mxu0 0
    %109 = vmatprep.subr.bf16.mxu0 0
    %110 = vmatpush1.bf16.msra.mxu0 0
    %111 = vmatprep.subr.bf16.mxu0 0
    %112 = vmatpush1.bf16.msra.mxu0 0
    %113 = vmatprep.subr.bf16.mxu0 0
    %114 = vmatpush1.bf16.msra.mxu0 0
    %115 = vmatprep.subr.bf16.mxu0 0
    %116 = vmatpush1.bf16.msra.mxu0 0
    %117 = vmatprep.subr.bf16.mxu0 0
    %118 = vmatpush1.bf16.msra.mxu0 0
    %119 = vmatprep.subr.bf16.mxu0 0
    %120 = vmatpush1.bf16.msra.mxu0 0
    %121 = vmatprep.subr.bf16.mxu0 0
    %122 = vmatpush1.bf16.msra.mxu0 0
    %123 = vmatprep.subr.bf16.mxu0 0
    %124 = vmatpush1.bf16.msra.mxu0 0
    %125 = vmatprep.mubr.bf16.mxu0 0
    %126 = vmatmul.mubr.bf16.gmra.mrb[0].mxu0 %v91
    %v127 = vpop.f32.mrb[0].mxu0
    %v128 = vadd.f32 %v75, %v127
    %v129 = vpop.f32.mrb[0].mxu0
    %v130 = vpop.f32.mrb[0].mxu0
    %v131 = vpop.f32.mrb[0].mxu0
    %132 = vdwg.mxu0
    %v133 = vpack.c.bf16 %v128, %v128
    %135 = vrot.lane.b32.xlu0 %v133, 96
    %v136 = vpop.permute.xlu0 %135
    %vm137 = vcmask 64512
    %v139 = vsel %vm137, %v133, 0
    %v142 = vsel %vm137, %v136, 0
    %144 = vmatprep.subr.bf16.mxu0 0
    %145 = vmatpush1.bf16.xpose.msra.mxu0 %v142
    %146 = vmatprep.subr.bf16.mxu0 0
    %147 = vmatpush1.bf16.xpose.msra.mxu0 0
    %148 = vmatprep.subr.bf16.mxu0 0
    %149 = vmatpush1.bf16.xpose.msra.mxu0 0
    %150 = vmatprep.subr.bf16.mxu0 0
    %151 = vmatpush1.bf16.xpose.msra.mxu0 0
    %152 = vmatprep.subr.bf16.mxu0 0
    %153 = vmatpush1.bf16.xpose.msra.mxu0 0
    %154 = vmatprep.subr.bf16.mxu0 0
    %155 = vmatpush1.bf16.xpose.msra.mxu0 0
    %156 = vmatprep.subr.bf16.mxu0 0
    %157 = vmatpush1.bf16.xpose.msra.mxu0 0
    %158 = vmatprep.subr.bf16.mxu0 0
    %159 = vmatpush1.bf16.xpose.msra.mxu0 0
    %160 = vmatprep.subr.bf16.mxu0 0
    %161 = vmatpush1.bf16.xpose.msra.mxu0 0
    %162 = vmatprep.subr.bf16.mxu0 0
    %163 = vmatpush1.bf16.xpose.msra.mxu0 0
    %164 = vmatprep.subr.bf16.mxu0 0
    %165 = vmatpush1.bf16.xpose.msra.mxu0 0
    %166 = vmatprep.subr.bf16.mxu0 0
    %167 = vmatpush1.bf16.xpose.msra.mxu0 0
    %168 = vmatprep.subr.bf16.mxu0 0
    %169 = vmatpush1.bf16.xpose.msra.mxu0 0
    %170 = vmatprep.subr.bf16.mxu0 0
    %171 = vmatpush1.bf16.xpose.msra.mxu0 0
    %172 = vmatprep.subr.bf16.mxu0 0
    %173 = vmatpush1.bf16.xpose.msra.mxu0 0
    %174 = vmatprep.subr.bf16.mxu0 0
    %175 = vmatpush1.bf16.xpose.msra.mxu0 0
    %176 = vmatprep.mubr.bf16.mxu0 0
    %177 = vmatmul.mubr.bf16.gmra.mrb[0].mxu0 %v139
    %v178 = vpop.f32.mrb[0].mxu0
    %v179 = vadd.f32 0.0, %v178
    %v180 = vpop.f32.mrb[0].mxu0
    %v181 = vpop.f32.mrb[0].mxu0
    %v182 = vpop.f32.mrb[0].mxu0
    %183 = vdwg.mxu0
    %v184 = vsel %vm137, %v179, -inf
    %185 = vmax.xlane.f32.xlu0 %v184
    %v186 = vpop.xlane.xlu0 %185
    %v187 = vsub.f32 %v179, %v186
    %v188 = vmul.f32 %v187, 1.442695
    %v189 = vpow.pop %v188
    %v190 = vsel %vm137, %v189, 0.0
    %191 = vadd.xlane.f32.xlu0 %v190
    %v192 = vpop.xlane.xlu0 %191
    %v193 = vrcp.pop %v192
    %v194 = vmul.f32 %v189, %v193
    %v195 = vpack.c.bf16 %v194, %v194
    %196 = vrot.lane.b32.xlu0 %v133, 64
    %v197 = vpop.permute.xlu0 %196
    %v199 = vsel %vm137, %v195, 0
    %vm201 = vcmask 1043456
    %v203 = vsel %vm201, %v197, 0
    %205 = vmatprep.subr.bf16.mxu0 0
    %206 = vmatpush1.bf16.msra.mxu0 %v203
    %207 = vmatprep.subr.bf16.mxu0 0
    %208 = vmatpush1.bf16.msra.mxu0 0
    %209 = vmatprep.subr.bf16.mxu0 0
    %210 = vmatpush1.bf16.msra.mxu0 0
    %211 = vmatprep.subr.bf16.mxu0 0
    %212 = vmatpush1.bf16.msra.mxu0 0
    %213 = vmatprep.subr.bf16.mxu0 0
    %214 = vmatpush1.bf16.msra.mxu0 0
    %215 = vmatprep.subr.bf16.mxu0 0
    %216 = vmatpush1.bf16.msra.mxu0 0
    %217 = vmatprep.subr.bf16.mxu0 0
    %218 = vmatpush1.bf16.msra.mxu0 0
    %219 = vmatprep.subr.bf16.mxu0 0
    %220 = vmatpush1.bf16.msra.mxu0 0
    %221 = vmatprep.subr.bf16.mxu0 0
    %222 = vmatpush1.bf16.msra.mxu0 0
    %223 = vmatprep.subr.bf16.mxu0 0
    %224 = vmatpush1.bf16.msra.mxu0 0
    %225 = vmatprep.subr.bf16.mxu0 0
    %226 = vmatpush1.bf16.msra.mxu0 0
    %227 = vmatprep.subr.bf16.mxu0 0
    %228 = vmatpush1.bf16.msra.mxu0 0
    %229 = vmatprep.subr.bf16.mxu0 0
    %230 = vmatpush1.bf16.msra.mxu0 0
    %231 = vmatprep.subr.bf16.mxu0 0
    %232 = vmatpush1.bf16.msra.mxu0 0
    %233 = vmatprep.subr.bf16.mxu0 0
    %234 = vmatpush1.bf16.msra.mxu0 0
    %235 = vmatprep.subr.bf16.mxu0 0
    %236 = vmatpush1.bf16.msra.mxu0 0
    %237 = vmatprep.mubr.bf16.mxu0 0
    %238 = vmatmul.mubr.bf16.gmra.mrb[0].mxu0 %v199
    %v239 = vpop.f32.mrb[0].mxu0
    %v240 = vadd.f32 0.0, %v239
    %v241 = vpop.f32.mrb[0].mxu0
    %v242 = vpop.f32.mrb[0].mxu0
    %v243 = vpop.f32.mrb[0].mxu0
    %244 = vdwg.mxu0
    %v245 = vpack.c.bf16 %v240, %v240
    %246 = vrot.lane.b32.xlu0 %v133, 120
    %v247 = vpop.permute.xlu0 %246
    %248 = vrot.lane.b32.xlu0 %v133, 88
    %v249 = vpop.permute.xlu0 %248
    %v251 = vsel %vm137, %v247, 0
    %v254 = vsel %vm137, %v249, 0
    %256 = vmatprep.subr.bf16.mxu0 0
    %257 = vmatpush1.bf16.xpose.msra.mxu0 %v254
    %258 = vmatprep.subr.bf16.mxu0 0
    %259 = vmatpush1.bf16.xpose.msra.mxu0 0
    %260 = vmatprep.subr.bf16.mxu0 0
    %261 = vmatpush1.bf16.xpose.msra.mxu0 0
    %262 = vmatprep.subr.bf16.mxu0 0
    %263 = vmatpush1.bf16.xpose.msra.mxu0 0
    %264 = vmatprep.subr.bf16.mxu0 0
    %265 = vmatpush1.bf16.xpose.msra.mxu0 0
    %266 = vmatprep.subr.bf16.mxu0 0
    %267 = vmatpush1.bf16.xpose.msra.mxu0 0
    %268 = vmatprep.subr.bf16.mxu0 0
    %269 = vmatpush1.bf16.xpose.msra.mxu0 0
    %270 = vmatprep.subr.bf16.mxu0 0
    %271 = vmatpush1.bf16.xpose.msra.mxu0 0
    %272 = vmatprep.subr.bf16.mxu0 0
    %273 = vmatpush1.bf16.xpose.msra.mxu0 0
    %274 = vmatprep.subr.bf16.mxu0 0
    %275 = vmatpush1.bf16.xpose.msra.mxu0 0
    %276 = vmatprep.subr.bf16.mxu0 0
    %277 = vmatpush1.bf16.xpose.msra.mxu0 0
    %278 = vmatprep.subr.bf16.mxu0 0
    %279 = vmatpush1.bf16.xpose.msra.mxu0 0
    %280 = vmatprep.subr.bf16.mxu0 0
    %281 = vmatpush1.bf16.xpose.msra.mxu0 0
    %282 = vmatprep.subr.bf16.mxu0 0
    %283 = vmatpush1.bf16.xpose.msra.mxu0 0
    %284 = vmatprep.subr.bf16.mxu0 0
    %285 = vmatpush1.bf16.xpose.msra.mxu0 0
    %286 = vmatprep.subr.bf16.mxu0 0
    %287 = vmatpush1.bf16.xpose.msra.mxu0 0
    %288 = vmatprep.mubr.bf16.mxu0 0
    %289 = vmatmul.mubr.bf16.gmra.mrb[0].mxu0 %v251
    %v290 = vpop.f32.mrb[0].mxu0
    %v291 = vadd.f32 0.0, %v290
    %v292 = vpop.f32.mrb[0].mxu0
    %v293 = vpop.f32.mrb[0].mxu0
    %v294 = vpop.f32.mrb[0].mxu0
    %295 = vdwg.mxu0
    %v296 = vsel %vm137, %v291, -inf
    %297 = vmax.xlane.f32.xlu0 %v296
    %v298 = vpop.xlane.xlu0 %297
    %v299 = vsub.f32 %v291, %v298
    %v300 = vmul.f32 %v299, 1.442695
    %v301 = vpow.pop %v300
    %v302 = vsel %vm137, %v301, 0.0
    %303 = vadd.xlane.f32.xlu0 %v302
    %v304 = vpop.xlane.xlu0 %303
    %v305 = vrcp.pop %v304
    %v306 = vmul.f32 %v301, %v305
    %v307 = vpack.c.bf16 %v306, %v306
    %308 = vrot.lane.b32.xlu0 %v133, 56
    %v309 = vpop.permute.xlu0 %308
    %v311 = vsel %vm137, %v307, 0
    %v314 = vsel %vm201, %v309, 0
    %316 = vmatprep.subr.bf16.mxu0 0
    %317 = vmatpush1.bf16.msra.mxu0 %v314
    %318 = vmatprep.subr.bf16.mxu0 0
    %319 = vmatpush1.bf16.msra.mxu0 0
    %320 = vmatprep.subr.bf16.mxu0 0
    %321 = vmatpush1.bf16.msra.mxu0 0
    %322 = vmatprep.subr.bf16.mxu0 0
    %323 = vmatpush1.bf16.msra.mxu0 0
    %324 = vmatprep.subr.bf16.mxu0 0
    %325 = vmatpush1.bf16.msra.mxu0 0
    %326 = vmatprep.subr.bf16.mxu0 0
    %327 = vmatpush1.bf16.msra.mxu0 0
    %328 = vmatprep.subr.bf16.mxu0 0
    %329 = vmatpush1.bf16.msra.mxu0 0
    %330 = vmatprep.subr.bf16.mxu0 0
    %331 = vmatpush1.bf16.msra.mxu0 0
    %332 = vmatprep.subr.bf16.mxu0 0
    %333 = vmatpush1.bf16.msra.mxu0 0
    %334 = vmatprep.subr.bf16.mxu0 0
    %335 = vmatpush1.bf16.msra.mxu0 0
    %336 = vmatprep.subr.bf16.mxu0 0
    %337 = vmatpush1.bf16.msra.mxu0 0
    %338 = vmatprep.subr.bf16.mxu0 0
    %339 = vmatpush1.bf16.msra.mxu0 0
    %340 = vmatprep.subr.bf16.mxu0 0
    %341 = vmatpush1.bf16.msra.mxu0 0
    %342 = vmatprep.subr.bf16.mxu0 0
    %343 = vmatpush1.bf16.msra.mxu0 0
    %344 = vmatprep.subr.bf16.mxu0 0
    %345 = vmatpush1.bf16.msra.mxu0 0
    %346 = vmatprep.subr.bf16.mxu0 0
    %347 = vmatpush1.bf16.msra.mxu0 0
    %348 = vmatprep.mubr.bf16.mxu0 0
    %349 = vmatmul.mubr.bf16.gmra.mrb[0].mxu0 %v311
    %v350 = vpop.f32.mrb[0].mxu0
    %v351 = vadd.f32 0.0, %v350
    %v352 = vpop.f32.mrb[0].mxu0
    %v353 = vpop.f32.mrb[0].mxu0
    %v354 = vpop.f32.mrb[0].mxu0
    %355 = vdwg.mxu0
    %v356 = vpack.c.bf16 %v351, %v351
    %v358 = vsel %vm137, %v356, 0
    %v361 = vsel %vm201, %v65, 0
    %363 = vmatprep.subr.bf16.mxu0 0
    %364 = vmatpush1.bf16.msra.mxu0 %v361
    %365 = vmatprep.subr.bf16.mxu0 0
    %366 = vmatpush1.bf16.msra.mxu0 0
    %367 = vmatprep.subr.bf16.mxu0 0
    %368 = vmatpush1.bf16.msra.mxu0 0
    %369 = vmatprep.subr.bf16.mxu0 0
    %370 = vmatpush1.bf16.msra.mxu0 0
    %371 = vmatprep.subr.bf16.mxu0 0
    %372 = vmatpush1.bf16.msra.mxu0 0
    %373 = vmatprep.subr.bf16.mxu0 0
    %374 = vmatpush1.bf16.msra.mxu0 0
    %375 = vmatprep.subr.bf16.mxu0 0
    %376 = vmatpush1.bf16.msra.mxu0 0
    %377 = vmatprep.subr.bf16.mxu0 0
    %378 = vmatpush1.bf16.msra.mxu0 0
    %379 = vmatprep.subr.bf16.mxu0 0
    %380 = vmatpush1.bf16.msra.mxu0 0
    %381 = vmatprep.subr.bf16.mxu0 0
    %382 = vmatpush1.bf16.msra.mxu0 0
    %383 = vmatprep.subr.bf16.mxu0 0
    %384 = vmatpush1.bf16.msra.mxu0 0
    %385 = vmatprep.subr.bf16.mxu0 0
    %386 = vmatpush1.bf16.msra.mxu0 0
    %387 = vmatprep.subr.bf16.mxu0 0
    %388 = vmatpush1.bf16.msra.mxu0 0
    %389 = vmatprep.subr.bf16.mxu0 0
    %390 = vmatpush1.bf16.msra.mxu0 0
    %391 = vmatprep.subr.bf16.mxu0 0
    %392 = vmatpush1.bf16.msra.mxu0 0
    %393 = vmatprep.subr.bf16.mxu0 0
    %394 = vmatpush1.bf16.msra.mxu0 0
    %395 = vmatprep.mubr.bf16.mxu0 0
    %396 = vmatmul.mubr.bf16.gmra.mrb[0].mxu0 %v358
    %v397 = vpop.f32.mrb[0].mxu0
    %v398 = vadd.f32 0.0, %v397
    %v399 = vpop.f32.mrb[0].mxu0
    %v400 = vpop.f32.mrb[0].mxu0
    %v401 = vpop.f32.mrb[0].mxu0
    %402 = vdwg.mxu0
    %v404 = vsel %vm137, %v245, 0
    %v407 = vsel %vm201, %v64, 0
    %409 = vmatprep.subr.bf16.mxu0 0
    %410 = vmatpush1.bf16.msra.mxu0 %v407
    %411 = vmatprep.subr.bf16.mxu0 0
    %412 = vmatpush1.bf16.msra.mxu0 0
    %413 = vmatprep.subr.bf16.mxu0 0
    %414 = vmatpush1.bf16.msra.mxu0 0
    %415 = vmatprep.subr.bf16.mxu0 0
    %416 = vmatpush1.bf16.msra.mxu0 0
    %417 = vmatprep.subr.bf16.mxu0 0
    %418 = vmatpush1.bf16.msra.mxu0 0
    %419 = vmatprep.subr.bf16.mxu0 0
    %420 = vmatpush1.bf16.msra.mxu0 0
    %421 = vmatprep.subr.bf16.mxu0 0
    %422 = vmatpush1.bf16.msra.mxu0 0
    %423 = vmatprep.subr.bf16.mxu0 0
    %424 = vmatpush1.bf16.msra.mxu0 0
    %425 = vmatprep.subr.bf16.mxu0 0
    %426 = vmatpush1.bf16.msra.mxu0 0
    %427 = vmatprep.subr.bf16.mxu0 0
    %428 = vmatpush1.bf16.msra.mxu0 0
    %429 = vmatprep.subr.bf16.mxu0 0
    %430 = vmatpush1.bf16.msra.mxu0 0
    %431 = vmatprep.subr.bf16.mxu0 0
    %432 = vmatpush1.bf16.msra.mxu0 0
    %433 = vmatprep.subr.bf16.mxu0 0
    %434 = vmatpush1.bf16.msra.mxu0 0
    %435 = vmatprep.subr.bf16.mxu0 0
    %436 = vmatpush1.bf16.msra.mxu0 0
    %437 = vmatprep.subr.bf16.mxu0 0
    %438 = vmatpush1.bf16.msra.mxu0 0
    %439 = vmatprep.subr.bf16.mxu0 0
    %440 = vmatpush1.bf16.msra.mxu0 0
    %441 = vmatprep.mubr.bf16.mxu0 0
    %442 = vmatmul.mubr.bf16.gmra.mrb[0].mxu0 %v404
    %v443 = vpop.f32.mrb[0].mxu0
    %v444 = vadd.f32 %v398, %v443
    %v445 = vpop.f32.mrb[0].mxu0
    %v446 = vpop.f32.mrb[0].mxu0
    %v447 = vpop.f32.mrb[0].mxu0
    %448 = vdwg.mxu0
    %449 = vrot.lane.b32.xlu0 %v133, 112
    %v450 = vpop.permute.xlu0 %449
    %451 = vrot.lane.b32.xlu0 %v133, 80
    %v452 = vpop.permute.xlu0 %451
    %v454 = vsel %vm137, %v450, 0
    %v457 = vsel %vm137, %v452, 0
    %459 = vmatprep.subr.bf16.mxu0 0
    %460 = vmatpush1.bf16.xpose.msra.mxu0 %v457
    %461 = vmatprep.subr.bf16.mxu0 0
    %462 = vmatpush1.bf16.xpose.msra.mxu0 0
    %463 = vmatprep.subr.bf16.mxu0 0
    %464 = vmatpush1.bf16.xpose.msra.mxu0 0
    %465 = vmatprep.subr.bf16.mxu0 0
    %466 = vmatpush1.bf16.xpose.msra.mxu0 0
    %467 = vmatprep.subr.bf16.mxu0 0
    %468 = vmatpush1.bf16.xpose.msra.mxu0 0
    %469 = vmatprep.subr.bf16.mxu0 0
    %470 = vmatpush1.bf16.xpose.msra.mxu0 0
    %471 = vmatprep.subr.bf16.mxu0 0
    %472 = vmatpush1.bf16.xpose.msra.mxu0 0
    %473 = vmatprep.subr.bf16.mxu0 0
    %474 = vmatpush1.bf16.xpose.msra.mxu0 0
    %475 = vmatprep.subr.bf16.mxu0 0
    %476 = vmatpush1.bf16.xpose.msra.mxu0 0
    %477 = vmatprep.subr.bf16.mxu0 0
    %478 = vmatpush1.bf16.xpose.msra.mxu0 0
    %479 = vmatprep.subr.bf16.mxu0 0
    %480 = vmatpush1.bf16.xpose.msra.mxu0 0
    %481 = vmatprep.subr.bf16.mxu0 0
    %482 = vmatpush1.bf16.xpose.msra.mxu0 0
    %483 = vmatprep.subr.bf16.mxu0 0
    %484 = vmatpush1.bf16.xpose.msra.mxu0 0
    %485 = vmatprep.subr.bf16.mxu0 0
    %486 = vmatpush1.bf16.xpose.msra.mxu0 0
    %487 = vmatprep.subr.bf16.mxu0 0
    %488 = vmatpush1.bf16.xpose.msra.mxu0 0
    %489 = vmatprep.subr.bf16.mxu0 0
    %490 = vmatpush1.bf16.xpose.msra.mxu0 0
    %491 = vmatprep.mubr.bf16.mxu0 0
    %492 = vmatmul.mubr.bf16.gmra.mrb[0].mxu0 %v454
    %v493 = vpop.f32.mrb[0].mxu0
    %v494 = vadd.f32 0.0, %v493
    %v495 = vpop.f32.mrb[0].mxu0
    %v496 = vpop.f32.mrb[0].mxu0
    %v497 = vpop.f32.mrb[0].mxu0
    %498 = vdwg.mxu0
    %v499 = vsel %vm137, %v494, -inf
    %500 = vmax.xlane.f32.xlu0 %v499
    %v501 = vpop.xlane.xlu0 %500
    %v502 = vsub.f32 %v494, %v501
    %v503 = vmul.f32 %v502, 1.442695
    %v504 = vpow.pop %v503
    %v505 = vsel %vm137, %v504, 0.0
    %506 = vadd.xlane.f32.xlu0 %v505
    %v507 = vpop.xlane.xlu0 %506
    %v508 = vrcp.pop %v507
    %v509 = vmul.f32 %v504, %v508
    %v510 = vpack.c.bf16 %v509, %v509
    %511 = vrot.lane.b32.xlu0 %v133, 48
    %v512 = vpop.permute.xlu0 %511
    %v514 = vsel %vm137, %v510, 0
    %v517 = vsel %vm201, %v512, 0
    %519 = vmatprep.subr.bf16.mxu0 0
    %520 = vmatpush1.bf16.msra.mxu0 %v517
    %521 = vmatprep.subr.bf16.mxu0 0
    %522 = vmatpush1.bf16.msra.mxu0 0
    %523 = vmatprep.subr.bf16.mxu0 0
    %524 = vmatpush1.bf16.msra.mxu0 0
    %525 = vmatprep.subr.bf16.mxu0 0
    %526 = vmatpush1.bf16.msra.mxu0 0
    %527 = vmatprep.subr.bf16.mxu0 0
    %528 = vmatpush1.bf16.msra.mxu0 0
    %529 = vmatprep.subr.bf16.mxu0 0
    %530 = vmatpush1.bf16.msra.mxu0 0
    %531 = vmatprep.subr.bf16.mxu0 0
    %532 = vmatpush1.bf16.msra.mxu0 0
    %533 = vmatprep.subr.bf16.mxu0 0
    %534 = vmatpush1.bf16.msra.mxu0 0
    %535 = vmatprep.subr.bf16.mxu0 0
    %536 = vmatpush1.bf16.msra.mxu0 0
    %537 = vmatprep.subr.bf16.mxu0 0
    %538 = vmatpush1.bf16.msra.mxu0 0
    %539 = vmatprep.subr.bf16.mxu0 0
    %540 = vmatpush1.bf16.msra.mxu0 0
    %541 = vmatprep.subr.bf16.mxu0 0
    %542 = vmatpush1.bf16.msra.mxu0 0
    %543 = vmatprep.subr.bf16.mxu0 0
    %544 = vmatpush1.bf16.msra.mxu0 0
    %545 = vmatprep.subr.bf16.mxu0 0
    %546 = vmatpush1.bf16.msra.mxu0 0
    %547 = vmatprep.subr.bf16.mxu0 0
    %548 = vmatpush1.bf16.msra.mxu0 0
    %549 = vmatprep.subr.bf16.mxu0 0
    %550 = vmatpush1.bf16.msra.mxu0 0
    %551 = vmatprep.mubr.bf16.mxu0 0
    %552 = vmatmul.mubr.bf16.gmra.mrb[0].mxu0 %v514
    %v553 = vpop.f32.mrb[0].mxu0
    %v554 = vadd.f32 0.0, %v553
    %v555 = vpop.f32.mrb[0].mxu0
    %v556 = vpop.f32.mrb[0].mxu0
    %v557 = vpop.f32.mrb[0].mxu0
    %558 = vdwg.mxu0
    %v559 = vpack.c.bf16 %v554, %v554
    %v561 = vsel %vm137, %v559, 0
    %v564 = vsel %vm201, %v66, 0
    %566 = vmatprep.subr.bf16.mxu0 0
    %567 = vmatpush1.bf16.msra.mxu0 %v564
    %568 = vmatprep.subr.bf16.mxu0 0
    %569 = vmatpush1.bf16.msra.mxu0 0
    %570 = vmatprep.subr.bf16.mxu0 0
    %571 = vmatpush1.bf16.msra.mxu0 0
    %572 = vmatprep.subr.bf16.mxu0 0
    %573 = vmatpush1.bf16.msra.mxu0 0
    %574 = vmatprep.subr.bf16.mxu0 0
    %575 = vmatpush1.bf16.msra.mxu0 0
    %576 = vmatprep.subr.bf16.mxu0 0
    %577 = vmatpush1.bf16.msra.mxu0 0
    %578 = vmatprep.subr.bf16.mxu0 0
    %579 = vmatpush1.bf16.msra.mxu0 0
    %580 = vmatprep.subr.bf16.mxu0 0
    %581 = vmatpush1.bf16.msra.mxu0 0
    %582 = vmatprep.subr.bf16.mxu0 0
    %583 = vmatpush1.bf16.msra.mxu0 0
    %584 = vmatprep.subr.bf16.mxu0 0
    %585 = vmatpush1.bf16.msra.mxu0 0
    %586 = vmatprep.subr.bf16.mxu0 0
    %587 = vmatpush1.bf16.msra.mxu0 0
    %588 = vmatprep.subr.bf16.mxu0 0
    %589 = vmatpush1.bf16.msra.mxu0 0
    %590 = vmatprep.subr.bf16.mxu0 0
    %591 = vmatpush1.bf16.msra.mxu0 0
    %592 = vmatprep.subr.bf16.mxu0 0
    %593 = vmatpush1.bf16.msra.mxu0 0
    %594 = vmatprep.subr.bf16.mxu0 0
    %595 = vmatpush1.bf16.msra.mxu0 0
    %596 = vmatprep.subr.bf16.mxu0 0
    %597 = vmatpush1.bf16.msra.mxu0 0
    %598 = vmatprep.mubr.bf16.mxu0 0
    %599 = vmatmul.mubr.bf16.gmra.mrb[0].mxu0 %v561
    %v600 = vpop.f32.mrb[0].mxu0
    %v601 = vadd.f32 0.0, %v600
    %v602 = vpop.f32.mrb[0].mxu0
    %v603 = vpop.f32.mrb[0].mxu0
    %v604 = vpop.f32.mrb[0].mxu0
    %605 = vdwg.mxu0
    %v606 = vadd.f32 %v444, %v601
    %607 = vrot.lane.b32.xlu0 %v133, 104
    %v608 = vpop.permute.xlu0 %607
    %609 = vrot.lane.b32.xlu0 %v133, 72
    %v610 = vpop.permute.xlu0 %609
    %v612 = vsel %vm137, %v608, 0
    %v615 = vsel %vm137, %v610, 0
    %617 = vmatprep.subr.bf16.mxu0 0
    %618 = vmatpush1.bf16.xpose.msra.mxu0 %v615
    %619 = vmatprep.subr.bf16.mxu0 0
    %620 = vmatpush1.bf16.xpose.msra.mxu0 0
    %621 = vmatprep.subr.bf16.mxu0 0
    %622 = vmatpush1.bf16.xpose.msra.mxu0 0
    %623 = vmatprep.subr.bf16.mxu0 0
    %624 = vmatpush1.bf16.xpose.msra.mxu0 0
    %625 = vmatprep.subr.bf16.mxu0 0
    %626 = vmatpush1.bf16.xpose.msra.mxu0 0
    %627 = vmatprep.subr.bf16.mxu0 0
    %628 = vmatpush1.bf16.xpose.msra.mxu0 0
    %629 = vmatprep.subr.bf16.mxu0 0
    %630 = vmatpush1.bf16.xpose.msra.mxu0 0
    %631 = vmatprep.subr.bf16.mxu0 0
    %632 = vmatpush1.bf16.xpose.msra.mxu0 0
    %633 = vmatprep.subr.bf16.mxu0 0
    %634 = vmatpush1.bf16.xpose.msra.mxu0 0
    %635 = vmatprep.subr.bf16.mxu0 0
    %636 = vmatpush1.bf16.xpose.msra.mxu0 0
    %637 = vmatprep.subr.bf16.mxu0 0
    %638 = vmatpush1.bf16.xpose.msra.mxu0 0
    %639 = vmatprep.subr.bf16.mxu0 0
    %640 = vmatpush1.bf16.xpose.msra.mxu0 0
    %641 = vmatprep.subr.bf16.mxu0 0
    %642 = vmatpush1.bf16.xpose.msra.mxu0 0
    %643 = vmatprep.subr.bf16.mxu0 0
    %644 = vmatpush1.bf16.xpose.msra.mxu0 0
    %645 = vmatprep.subr.bf16.mxu0 0
    %646 = vmatpush1.bf16.xpose.msra.mxu0 0
    %647 = vmatprep.subr.bf16.mxu0 0
    %648 = vmatpush1.bf16.xpose.msra.mxu0 0
    %649 = vmatprep.mubr.bf16.mxu0 0
    %650 = vmatmul.mubr.bf16.gmra.mrb[0].mxu0 %v612
    %v651 = vpop.f32.mrb[0].mxu0
    %v652 = vadd.f32 0.0, %v651
    %v653 = vpop.f32.mrb[0].mxu0
    %v654 = vpop.f32.mrb[0].mxu0
    %v655 = vpop.f32.mrb[0].mxu0
    %656 = vdwg.mxu0
    %v657 = vsel %vm137, %v652, -inf
    %658 = vmax.xlane.f32.xlu0 %v657
    %v659 = vpop.xlane.xlu0 %658
    %v660 = vsub.f32 %v652, %v659
    %v661 = vmul.f32 %v660, 1.442695
    %v662 = vpow.pop %v661
    %v663 = vsel %vm137, %v662, 0.0
    %664 = vadd.xlane.f32.xlu0 %v663
    %v665 = vpop.xlane.xlu0 %664
    %v666 = vrcp.pop %v665
    %v667 = vmul.f32 %v662, %v666
    %v668 = vpack.c.bf16 %v667, %v667
    %669 = vrot.lane.b32.xlu0 %v133, 40
    %v670 = vpop.permute.xlu0 %669
    %v672 = vsel %vm137, %v668, 0
    %v675 = vsel %vm201, %v670, 0
    %677 = vmatprep.subr.bf16.mxu0 0
    %678 = vmatpush1.bf16.msra.mxu0 %v675
    %679 = vmatprep.subr.bf16.mxu0 0
    %680 = vmatpush1.bf16.msra.mxu0 0
    %681 = vmatprep.subr.bf16.mxu0 0
    %682 = vmatpush1.bf16.msra.mxu0 0
    %683 = vmatprep.subr.bf16.mxu0 0
    %684 = vmatpush1.bf16.msra.mxu0 0
    %685 = vmatprep.subr.bf16.mxu0 0
    %686 = vmatpush1.bf16.msra.mxu0 0
    %687 = vmatprep.subr.bf16.mxu0 0
    %688 = vmatpush1.bf16.msra.mxu0 0
    %689 = vmatprep.subr.bf16.mxu0 0
    %690 = vmatpush1.bf16.msra.mxu0 0
    %691 = vmatprep.subr.bf16.mxu0 0
    %692 = vmatpush1.bf16.msra.mxu0 0
    %693 = vmatprep.subr.bf16.mxu0 0
    %694 = vmatpush1.bf16.msra.mxu0 0
    %695 = vmatprep.subr.bf16.mxu0 0
    %696 = vmatpush1.bf16.msra.mxu0 0
    %697 = vmatprep.subr.bf16.mxu0 0
    %698 = vmatpush1.bf16.msra.mxu0 0
    %699 = vmatprep.subr.bf16.mxu0 0
    %700 = vmatpush1.bf16.msra.mxu0 0
    %701 = vmatprep.subr.bf16.mxu0 0
    %702 = vmatpush1.bf16.msra.mxu0 0
    %703 = vmatprep.subr.bf16.mxu0 0
    %704 = vmatpush1.bf16.msra.mxu0 0
    %705 = vmatprep.subr.bf16.mxu0 0
    %706 = vmatpush1.bf16.msra.mxu0 0
    %707 = vmatprep.subr.bf16.mxu0 0
    %708 = vmatpush1.bf16.msra.mxu0 0
    %709 = vmatprep.mubr.bf16.mxu0 0
    %710 = vmatmul.mubr.bf16.gmra.mrb[0].mxu0 %v672
    %v711 = vpop.f32.mrb[0].mxu0
    %v712 = vadd.f32 0.0, %v711
    %v713 = vpop.f32.mrb[0].mxu0
    %v714 = vpop.f32.mrb[0].mxu0
    %v715 = vpop.f32.mrb[0].mxu0
    %716 = vdwg.mxu0
    %v717 = vpack.c.bf16 %v712, %v712
    %v719 = vsel %vm137, %v717, 0
    %v722 = vsel %vm201, %v67, 0
    %724 = vmatprep.subr.bf16.mxu0 0
    %725 = vmatpush1.bf16.msra.mxu0 %v722
    %726 = vmatprep.subr.bf16.mxu0 0
    %727 = vmatpush1.bf16.msra.mxu0 0
    %728 = vmatprep.subr.bf16.mxu0 0
    %729 = vmatpush1.bf16.msra.mxu0 0
    %730 = vmatprep.subr.bf16.mxu0 0
    %731 = vmatpush1.bf16.msra.mxu0 0
    %732 = vmatprep.subr.bf16.mxu0 0
    %733 = vmatpush1.bf16.msra.mxu0 0
    %734 = vmatprep.subr.bf16.mxu0 0
    %735 = vmatpush1.bf16.msra.mxu0 0
    %736 = vmatprep.subr.bf16.mxu0 0
    %737 = vmatpush1.bf16.msra.mxu0 0
    %738 = vmatprep.subr.bf16.mxu0 0
    %739 = vmatpush1.bf16.msra.mxu0 0
    %740 = vmatprep.subr.bf16.mxu0 0
    %741 = vmatpush1.bf16.msra.mxu0 0
    %742 = vmatprep.subr.bf16.mxu0 0
    %743 = vmatpush1.bf16.msra.mxu0 0
    %744 = vmatprep.subr.bf16.mxu0 0
    %745 = vmatpush1.bf16.msra.mxu0 0
    %746 = vmatprep.subr.bf16.mxu0 0
    %747 = vmatpush1.bf16.msra.mxu0 0
    %748 = vmatprep.subr.bf16.mxu0 0
    %749 = vmatpush1.bf16.msra.mxu0 0
    %750 = vmatprep.subr.bf16.mxu0 0
    %751 = vmatpush1.bf16.msra.mxu0 0
    %752 = vmatprep.subr.bf16.mxu0 0
    %753 = vmatpush1.bf16.msra.mxu0 0
    %754 = vmatprep.subr.bf16.mxu0 0
    %755 = vmatpush1.bf16.msra.mxu0 0
    %756 = vmatprep.mubr.bf16.mxu0 0
    %757 = vmatmul.mubr.bf16.gmra.mrb[0].mxu0 %v719
    %v758 = vpop.f32.mrb[0].mxu0
    %v759 = vadd.f32 0.0, %v758
    %v760 = vpop.f32.mrb[0].mxu0
    %v761 = vpop.f32.mrb[0].mxu0
    %v762 = vpop.f32.mrb[0].mxu0
    %763 = vdwg.mxu0
    %v764 = vadd.f32 %v606, %v759
    %765 = vrot.lane.b32.xlu0 %v75, 32
    %v766 = vpop.permute.xlu0 %765
    %v768 = vadd.f32 %v764, %v766
    %v769 = vadd.f32 %v768, %v69
    %770 = vst.msk [vmem:[#allocation8] sm:$0xff] %vm89, %v769
    %s771 = scalar_lea.vmem [#allocation2], 8
    %v772 = vld [vmem:[%s771] sm:$0xff]
    %v773 = vpack.c.bf16 %v772, %v772
    %v775 = vsel %vm89, %v773, 0
    %777 = vmatprep.subr.bf16.mxu0 0
    %778 = vmatpush1.bf16.msra.mxu0 %v85
    %779 = vmatprep.subr.bf16.mxu0 0
    %780 = vmatpush1.bf16.msra.mxu0 %v86
    %781 = vmatprep.subr.bf16.mxu0 0
    %782 = vmatpush1.bf16.msra.mxu0 0
    %783 = vmatprep.subr.bf16.mxu0 0
    %784 = vmatpush1.bf16.msra.mxu0 0
    %785 = vmatprep.subr.bf16.mxu0 0
    %786 = vmatpush1.bf16.msra.mxu0 0
    %787 = vmatprep.subr.bf16.mxu0 0
    %788 = vmatpush1.bf16.msra.mxu0 0
    %789 = vmatprep.subr.bf16.mxu0 0
    %790 = vmatpush1.bf16.msra.mxu0 0
    %791 = vmatprep.subr.bf16.mxu0 0
    %792 = vmatpush1.bf16.msra.mxu0 0
    %793 = vmatprep.subr.bf16.mxu0 0
    %794 = vmatpush1.bf16.msra.mxu0 0
    %795 = vmatprep.subr.bf16.mxu0 0
    %796 = vmatpush1.bf16.msra.mxu0 0
    %797 = vmatprep.subr.bf16.mxu0 0
    %798 = vmatpush1.bf16.msra.mxu0 0
    %799 = vmatprep.subr.bf16.mxu0 0
    %800 = vmatpush1.bf16.msra.mxu0 0
    %801 = vmatprep.subr.bf16.mxu0 0
    %802 = vmatpush1.bf16.msra.mxu0 0
    %803 = vmatprep.subr.bf16.mxu0 0
    %804 = vmatpush1.bf16.msra.mxu0 0
    %805 = vmatprep.subr.bf16.mxu0 0
    %806 = vmatpush1.bf16.msra.mxu0 0
    %807 = vmatprep.subr.bf16.mxu0 0
    %808 = vmatpush1.bf16.msra.mxu0 0
    %809 = vmatprep.mubr.bf16.mxu0 0
    %810 = vmatmul.mubr.bf16.gmra.mrb[0].mxu0 %v775
    %v811 = vpop.f32.mrb[0].mxu0
    %v812 = vadd.f32 %v75, %v811
    %v813 = vpop.f32.mrb[0].mxu0
    %v814 = vpop.f32.mrb[0].mxu0
    %v815 = vpop.f32.mrb[0].mxu0
    %816 = vdwg.mxu0
    %v817 = vpack.c.bf16 %v812, %v812
    %819 = vrot.lane.b32.xlu0 %v817, 96
    %v820 = vpop.permute.xlu0 %819
    %v822 = vsel %vm137, %v817, 0
    %v825 = vsel %vm137, %v820, 0
    %827 = vmatprep.subr.bf16.mxu0 0
    %828 = vmatpush1.bf16.xpose.msra.mxu0 %v825
    %829 = vmatprep.subr.bf16.mxu0 0
    %830 = vmatpush1.bf16.xpose.msra.mxu0 0
    %831 = vmatprep.subr.bf16.mxu0 0
    %832 = vmatpush1.bf16.xpose.msra.mxu0 0
    %833 = vmatprep.subr.bf16.mxu0 0
    %834 = vmatpush1.bf16.xpose.msra.mxu0 0
    %835 = vmatprep.subr.bf16.mxu0 0
    %836 = vmatpush1.bf16.xpose.msra.mxu0 0
    %837 = vmatprep.subr.bf16.mxu0 0
    %838 = vmatpush1.bf16.xpose.msra.mxu0 0
    %839 = vmatprep.subr.bf16.mxu0 0
    %840 = vmatpush1.bf16.xpose.msra.mxu0 0
    %841 = vmatprep.subr.bf16.mxu0 0
    %842 = vmatpush1.bf16.xpose.msra.mxu0 0
    %843 = vmatprep.subr.bf16.mxu0 0
    %844 = vmatpush1.bf16.xpose.msra.mxu0 0
    %845 = vmatprep.subr.bf16.mxu0 0
    %846 = vmatpush1.bf16.xpose.msra.mxu0 0
    %847 = vmatprep.subr.bf16.mxu0 0
    %848 = vmatpush1.bf16.xpose.msra.mxu0 0
    %849 = vmatprep.subr.bf16.mxu0 0
    %850 = vmatpush1.bf16.xpose.msra.mxu0 0
    %851 = vmatprep.subr.bf16.mxu0 0
    %852 = vmatpush1.bf16.xpose.msra.mxu0 0
    %853 = vmatprep.subr.bf16.mxu0 0
    %854 = vmatpush1.bf16.xpose.msra.mxu0 0
    %855 = vmatprep.subr.bf16.mxu0 0
    %856 = vmatpush1.bf16.xpose.msra.mxu0 0
    %857 = vmatprep.subr.bf16.mxu0 0
    %858 = vmatpush1.bf16.xpose.msra.mxu0 0
    %859 = vmatprep.mubr.bf16.mxu0 0
    %860 = vmatmul.mubr.bf16.gmra.mrb[0].mxu0 %v822
    %v861 = vpop.f32.mrb[0].mxu0
    %v862 = vadd.f32 0.0, %v861
    %v863 = vpop.f32.mrb[0].mxu0
    %v864 = vpop.f32.mrb[0].mxu0
    %v865 = vpop.f32.mrb[0].mxu0
    %866 = vdwg.mxu0
    %v867 = vsel %vm137, %v862, -inf
    %868 = vmax.xlane.f32.xlu0 %v867
    %v869 = vpop.xlane.xlu0 %868
    %v870 = vsub.f32 %v862, %v869
    %v871 = vmul.f32 %v870, 1.442695
    %v872 = vpow.pop %v871
    %v873 = vsel %vm137, %v872, 0.0
    %874 = vadd.xlane.f32.xlu0 %v873
    %v875 = vpop.xlane.xlu0 %874
    %v876 = vrcp.pop %v875
    %v877 = vmul.f32 %v872, %v876
    %v878 = vpack.c.bf16 %v877, %v877
    %879 = vrot.lane.b32.xlu0 %v817, 64
    %v880 = vpop.permute.xlu0 %879
    %v882 = vsel %vm137, %v878, 0
    %v885 = vsel %vm201, %v880, 0
    %887 = vmatprep.subr.bf16.mxu0 0
    %888 = vmatpush1.bf16.msra.mxu0 %v885
    %889 = vmatprep.subr.bf16.mxu0 0
    %890 = vmatpush1.bf16.msra.mxu0 0
    %891 = vmatprep.subr.bf16.mxu0 0
    %892 = vmatpush1.bf16.msra.mxu0 0
    %893 = vmatprep.subr.bf16.mxu0 0
    %894 = vmatpush1.bf16.msra.mxu0 0
    %895 = vmatprep.subr.bf16.mxu0 0
    %896 = vmatpush1.bf16.msra.mxu0 0
    %897 = vmatprep.subr.bf16.mxu0 0
    %898 = vmatpush1.bf16.msra.mxu0 0
    %899 = vmatprep.subr.bf16.mxu0 0
    %900 = vmatpush1.bf16.msra.mxu0 0
    %901 = vmatprep.subr.bf16.mxu0 0
    %902 = vmatpush1.bf16.msra.mxu0 0
    %903 = vmatprep.subr.bf16.mxu0 0
    %904 = vmatpush1.bf16.msra.mxu0 0
    %905 = vmatprep.subr.bf16.mxu0 0
    %906 = vmatpush1.bf16.msra.mxu0 0
    %907 = vmatprep.subr.bf16.mxu0 0
    %908 = vmatpush1.bf16.msra.mxu0 0
    %909 = vmatprep.subr.bf16.mxu0 0
    %910 = vmatpush1.bf16.msra.mxu0 0
    %911 = vmatprep.subr.bf16.mxu0 0
    %912 = vmatpush1.bf16.msra.mxu0 0
    %913 = vmatprep.subr.bf16.mxu0 0
    %914 = vmatpush1.bf16.msra.mxu0 0
    %915 = vmatprep.subr.bf16.mxu0 0
    %916 = vmatpush1.bf16.msra.mxu0 0
    %917 = vmatprep.subr.bf16.mxu0 0
    %918 = vmatpush1.bf16.msra.mxu0 0
    %919 = vmatprep.mubr.bf16.mxu0 0
    %920 = vmatmul.mubr.bf16.gmra.mrb[0].mxu0 %v882
    %v921 = vpop.f32.mrb[0].mxu0
    %v922 = vadd.f32 0.0, %v921
    %v923 = vpop.f32.mrb[0].mxu0
    %v924 = vpop.f32.mrb[0].mxu0
    %v925 = vpop.f32.mrb[0].mxu0
    %926 = vdwg.mxu0
    %v927 = vpack.c.bf16 %v922, %v922
    %928 = vrot.lane.b32.xlu0 %v817, 120
    %v929 = vpop.permute.xlu0 %928
    %930 = vrot.lane.b32.xlu0 %v817, 88
    %v931 = vpop.permute.xlu0 %930
    %v933 = vsel %vm137, %v929, 0
    %v936 = vsel %vm137, %v931, 0
    %938 = vmatprep.subr.bf16.mxu0 0
    %939 = vmatpush1.bf16.xpose.msra.mxu0 %v936
    %940 = vmatprep.subr.bf16.mxu0 0
    %941 = vmatpush1.bf16.xpose.msra.mxu0 0
    %942 = vmatprep.subr.bf16.mxu0 0
    %943 = vmatpush1.bf16.xpose.msra.mxu0 0
    %944 = vmatprep.subr.bf16.mxu0 0
    %945 = vmatpush1.bf16.xpose.msra.mxu0 0
    %946 = vmatprep.subr.bf16.mxu0 0
    %947 = vmatpush1.bf16.xpose.msra.mxu0 0
    %948 = vmatprep.subr.bf16.mxu0 0
    %949 = vmatpush1.bf16.xpose.msra.mxu0 0
    %950 = vmatprep.subr.bf16.mxu0 0
    %951 = vmatpush1.bf16.xpose.msra.mxu0 0
    %952 = vmatprep.subr.bf16.mxu0 0
    %953 = vmatpush1.bf16.xpose.msra.mxu0 0
    %954 = vmatprep.subr.bf16.mxu0 0
    %955 = vmatpush1.bf16.xpose.msra.mxu0 0
    %956 = vmatprep.subr.bf16.mxu0 0
    %957 = vmatpush1.bf16.xpose.msra.mxu0 0
    %958 = vmatprep.subr.bf16.mxu0 0
    %959 = vmatpush1.bf16.xpose.msra.mxu0 0
    %960 = vmatprep.subr.bf16.mxu0 0
    %961 = vmatpush1.bf16.xpose.msra.mxu0 0
    %962 = vmatprep.subr.bf16.mxu0 0
    %963 = vmatpush1.bf16.xpose.msra.mxu0 0
    %964 = vmatprep.subr.bf16.mxu0 0
    %965 = vmatpush1.bf16.xpose.msra.mxu0 0
    %966 = vmatprep.subr.bf16.mxu0 0
    %967 = vmatpush1.bf16.xpose.msra.mxu0 0
    %968 = vmatprep.subr.bf16.mxu0 0
    %969 = vmatpush1.bf16.xpose.msra.mxu0 0
    %970 = vmatprep.mubr.bf16.mxu0 0
    %971 = vmatmul.mubr.bf16.gmra.mrb[0].mxu0 %v933
    %v972 = vpop.f32.mrb[0].mxu0
    %v973 = vadd.f32 0.0, %v972
    %v974 = vpop.f32.mrb[0].mxu0
    %v975 = vpop.f32.mrb[0].mxu0
    %v976 = vpop.f32.mrb[0].mxu0
    %977 = vdwg.mxu0
    %v978 = vsel %vm137, %v973, -inf
    %979 = vmax.xlane.f32.xlu0 %v978
    %v980 = vpop.xlane.xlu0 %979
    %v981 = vsub.f32 %v973, %v980
    %v982 = vmul.f32 %v981, 1.442695
    %v983 = vpow.pop %v982
    %v984 = vsel %vm137, %v983, 0.0
    %985 = vadd.xlane.f32.xlu0 %v984
    %v986 = vpop.xlane.xlu0 %985
    %v987 = vrcp.pop %v986
    %v988 = vmul.f32 %v983, %v987
    %v989 = vpack.c.bf16 %v988, %v988
    %990 = vrot.lane.b32.xlu0 %v817, 56
    %v991 = vpop.permute.xlu0 %990
    %v993 = vsel %vm137, %v989, 0
    %v996 = vsel %vm201, %v991, 0
    %998 = vmatprep.subr.bf16.mxu0 0
    %999 = vmatpush1.bf16.msra.mxu0 %v996
    %1000 = vmatprep.subr.bf16.mxu0 0
    %1001 = vmatpush1.bf16.msra.mxu0 0
    %1002 = vmatprep.subr.bf16.mxu0 0
    %1003 = vmatpush1.bf16.msra.mxu0 0
    %1004 = vmatprep.subr.bf16.mxu0 0
    %1005 = vmatpush1.bf16.msra.mxu0 0
    %1006 = vmatprep.subr.bf16.mxu0 0
    %1007 = vmatpush1.bf16.msra.mxu0 0
    %1008 = vmatprep.subr.bf16.mxu0 0
    %1009 = vmatpush1.bf16.msra.mxu0 0
    %1010 = vmatprep.subr.bf16.mxu0 0
    %1011 = vmatpush1.bf16.msra.mxu0 0
    %1012 = vmatprep.subr.bf16.mxu0 0
    %1013 = vmatpush1.bf16.msra.mxu0 0
    %1014 = vmatprep.subr.bf16.mxu0 0
    %1015 = vmatpush1.bf16.msra.mxu0 0
    %1016 = vmatprep.subr.bf16.mxu0 0
    %1017 = vmatpush1.bf16.msra.mxu0 0
    %1018 = vmatprep.subr.bf16.mxu0 0
    %1019 = vmatpush1.bf16.msra.mxu0 0
    %1020 = vmatprep.subr.bf16.mxu0 0
    %1021 = vmatpush1.bf16.msra.mxu0 0
    %1022 = vmatprep.subr.bf16.mxu0 0
    %1023 = vmatpush1.bf16.msra.mxu0 0
    %1024 = vmatprep.subr.bf16.mxu0 0
    %1025 = vmatpush1.bf16.msra.mxu0 0
    %1026 = vmatprep.subr.bf16.mxu0 0
    %1027 = vmatpush1.bf16.msra.mxu0 0
    %1028 = vmatprep.subr.bf16.mxu0 0
    %1029 = vmatpush1.bf16.msra.mxu0 0
    %1030 = vmatprep.mubr.bf16.mxu0 0
    %1031 = vmatmul.mubr.bf16.gmra.mrb[0].mxu0 %v993
    %v1032 = vpop.f32.mrb[0].mxu0
    %v1033 = vadd.f32 0.0, %v1032
    %v1034 = vpop.f32.mrb[0].mxu0
    %v1035 = vpop.f32.mrb[0].mxu0
    %v1036 = vpop.f32.mrb[0].mxu0
    %1037 = vdwg.mxu0
    %v1038 = vpack.c.bf16 %v1033, %v1033
    %v1040 = vsel %vm137, %v1038, 0
    %1042 = vmatprep.subr.bf16.mxu0 0
    %1043 = vmatpush1.bf16.msra.mxu0 %v361
    %1044 = vmatprep.subr.bf16.mxu0 0
    %1045 = vmatpush1.bf16.msra.mxu0 0
    %1046 = vmatprep.subr.bf16.mxu0 0
    %1047 = vmatpush1.bf16.msra.mxu0 0
    %1048 = vmatprep.subr.bf16.mxu0 0
    %1049 = vmatpush1.bf16.msra.mxu0 0
    %1050 = vmatprep.subr.bf16.mxu0 0
    %1051 = vmatpush1.bf16.msra.mxu0 0
    %1052 = vmatprep.subr.bf16.mxu0 0
    %1053 = vmatpush1.bf16.msra.mxu0 0
    %1054 = vmatprep.subr.bf16.mxu0 0
    %1055 = vmatpush1.bf16.msra.mxu0 0
    %1056 = vmatprep.subr.bf16.mxu0 0
    %1057 = vmatpush1.bf16.msra.mxu0 0
    %1058 = vmatprep.subr.bf16.mxu0 0
    %1059 = vmatpush1.bf16.msra.mxu0 0
    %1060 = vmatprep.subr.bf16.mxu0 0
    %1061 = vmatpush1.bf16.msra.mxu0 0
    %1062 = vmatprep.subr.bf16.mxu0 0
    %1063 = vmatpush1.bf16.msra.mxu0 0
    %1064 = vmatprep.subr.bf16.mxu0 0
    %1065 = vmatpush1.bf16.msra.mxu0 0
    %1066 = vmatprep.subr.bf16.mxu0 0
    %1067 = vmatpush1.bf16.msra.mxu0 0
    %1068 = vmatprep.subr.bf16.mxu0 0
    %1069 = vmatpush1.bf16.msra.mxu0 0
    %1070 = vmatprep.subr.bf16.mxu0 0
    %1071 = vmatpush1.bf16.msra.mxu0 0
    %1072 = vmatprep.subr.bf16.mxu0 0
    %1073 = vmatpush1.bf16.msra.mxu0 0
    %1074 = vmatprep.mubr.bf16.mxu0 0
    %1075 = vmatmul.mubr.bf16.gmra.mrb[0].mxu0 %v1040
    %v1076 = vpop.f32.mrb[0].mxu0
    %v1077 = vadd.f32 0.0, %v1076
    %v1078 = vpop.f32.mrb[0].mxu0
    %v1079 = vpop.f32.mrb[0].mxu0
    %v1080 = vpop.f32.mrb[0].mxu0
    %1081 = vdwg.mxu0
    %v1083 = vsel %vm137, %v927, 0
    %1085 = vmatprep.subr.bf16.mxu0 0
    %1086 = vmatpush1.bf16.msra.mxu0 %v407
    %1087 = vmatprep.subr.bf16.mxu0 0
    %1088 = vmatpush1.bf16.msra.mxu0 0
    %1089 = vmatprep.subr.bf16.mxu0 0
    %1090 = vmatpush1.bf16.msra.mxu0 0
    %1091 = vmatprep.subr.bf16.mxu0 0
    %1092 = vmatpush1.bf16.msra.mxu0 0
    %1093 = vmatprep.subr.bf16.mxu0 0
    %1094 = vmatpush1.bf16.msra.mxu0 0
    %1095 = vmatprep.subr.bf16.mxu0 0
    %1096 = vmatpush1.bf16.msra.mxu0 0
    %1097 = vmatprep.subr.bf16.mxu0 0
    %1098 = vmatpush1.bf16.msra.mxu0 0
    %1099 = vmatprep.subr.bf16.mxu0 0
    %1100 = vmatpush1.bf16.msra.mxu0 0
    %1101 = vmatprep.subr.bf16.mxu0 0
    %1102 = vmatpush1.bf16.msra.mxu0 0
    %1103 = vmatprep.subr.bf16.mxu0 0
    %1104 = vmatpush1.bf16.msra.mxu0 0
    %1105 = vmatprep.subr.bf16.mxu0 0
    %1106 = vmatpush1.bf16.msra.mxu0 0
    %1107 = vmatprep.subr.bf16.mxu0 0
    %1108 = vmatpush1.bf16.msra.mxu0 0
    %1109 = vmatprep.subr.bf16.mxu0 0
    %1110 = vmatpush1.bf16.msra.mxu0 0
    %1111 = vmatprep.subr.bf16.mxu0 0
    %1112 = vmatpush1.bf16.msra.mxu0 0
    %1113 = vmatprep.subr.bf16.mxu0 0
    %1114 = vmatpush1.bf16.msra.mxu0 0
    %1115 = vmatprep.subr.bf16.mxu0 0
    %1116 = vmatpush1.bf16.msra.mxu0 0
    %1117 = vmatprep.mubr.bf16.mxu0 0
    %1118 = vmatmul.mubr.bf16.gmra.mrb[0].mxu0 %v1083
    %v1119 = vpop.f32.mrb[0].mxu0
    %v1120 = vadd.f32 %v1077, %v1119
    %v1121 = vpop.f32.mrb[0].mxu0
    %v1122 = vpop.f32.mrb[0].mxu0
    %v1123 = vpop.f32.mrb[0].mxu0
    %1124 = vdwg.mxu0
    %1125 = vrot.lane.b32.xlu0 %v817, 112
    %v1126 = vpop.permute.xlu0 %1125
    %1127 = vrot.lane.b32.xlu0 %v817, 80
    %v1128 = vpop.permute.xlu0 %1127
    %v1130 = vsel %vm137, %v1126, 0
    %v1133 = vsel %vm137, %v1128, 0
    %1135 = vmatprep.subr.bf16.mxu0 0
    %1136 = vmatpush1.bf16.xpose.msra.mxu0 %v1133
    %1137 = vmatprep.subr.bf16.mxu0 0
    %1138 = vmatpush1.bf16.xpose.msra.mxu0 0
    %1139 = vmatprep.subr.bf16.mxu0 0
    %1140 = vmatpush1.bf16.xpose.msra.mxu0 0
    %1141 = vmatprep.subr.bf16.mxu0 0
    %1142 = vmatpush1.bf16.xpose.msra.mxu0 0
    %1143 = vmatprep.subr.bf16.mxu0 0
    %1144 = vmatpush1.bf16.xpose.msra.mxu0 0
    %1145 = vmatprep.subr.bf16.mxu0 0
    %1146 = vmatpush1.bf16.xpose.msra.mxu0 0
    %1147 = vmatprep.subr.bf16.mxu0 0
    %1148 = vmatpush1.bf16.xpose.msra.mxu0 0
    %1149 = vmatprep.subr.bf16.mxu0 0
    %1150 = vmatpush1.bf16.xpose.msra.mxu0 0
    %1151 = vmatprep.subr.bf16.mxu0 0
    %1152 = vmatpush1.bf16.xpose.msra.mxu0 0
    %1153 = vmatprep.subr.bf16.mxu0 0
    %1154 = vmatpush1.bf16.xpose.msra.mxu0 0
    %1155 = vmatprep.subr.bf16.mxu0 0
    %1156 = vmatpush1.bf16.xpose.msra.mxu0 0
    %1157 = vmatprep.subr.bf16.mxu0 0
    %1158 = vmatpush1.bf16.xpose.msra.mxu0 0
    %1159 = vmatprep.subr.bf16.mxu0 0
    %1160 = vmatpush1.bf16.xpose.msra.mxu0 0
    %1161 = vmatprep.subr.bf16.mxu0 0
    %1162 = vmatpush1.bf16.xpose.msra.mxu0 0
    %1163 = vmatprep.subr.bf16.mxu0 0
    %1164 = vmatpush1.bf16.xpose.msra.mxu0 0
    %1165 = vmatprep.subr.bf16.mxu0 0
    %1166 = vmatpush1.bf16.xpose.msra.mxu0 0
    %1167 = vmatprep.mubr.bf16.mxu0 0
    %1168 = vmatmul.mubr.bf16.gmra.mrb[0].mxu0 %v1130
    %v1169 = vpop.f32.mrb[0].mxu0
    %v1170 = vadd.f32 0.0, %v1169
    %v1171 = vpop.f32.mrb[0].mxu0
    %v1172 = vpop.f32.mrb[0].mxu0
    %v1173 = vpop.f32.mrb[0].mxu0
    %1174 = vdwg.mxu0
    %v1175 = vsel %vm137, %v1170, -inf
    %1176 = vmax.xlane.f32.xlu0 %v1175
    %v1177 = vpop.xlane.xlu0 %1176
    %v1178 = vsub.f32 %v1170, %v1177
    %v1179 = vmul.f32 %v1178, 1.442695
    %v1180 = vpow.pop %v1179
    %v1181 = vsel %vm137, %v1180, 0.0
    %1182 = vadd.xlane.f32.xlu0 %v1181
    %v1183 = vpop.xlane.xlu0 %1182
    %v1184 = vrcp.pop %v1183
    %v1185 = vmul.f32 %v1180, %v1184
    %v1186 = vpack.c.bf16 %v1185, %v1185
    %1187 = vrot.lane.b32.xlu0 %v817, 48
    %v1188 = vpop.permute.xlu0 %1187
    %v1190 = vsel %vm137, %v1186, 0
    %v1193 = vsel %vm201, %v1188, 0
    %1195 = vmatprep.subr.bf16.mxu0 0
    %1196 = vmatpush1.bf16.msra.mxu0 %v1193
    %1197 = vmatprep.subr.bf16.mxu0 0
    %1198 = vmatpush1.bf16.msra.mxu0 0
    %1199 = vmatprep.subr.bf16.mxu0 0
    %1200 = vmatpush1.bf16.msra.mxu0 0
    %1201 = vmatprep.subr.bf16.mxu0 0
    %1202 = vmatpush1.bf16.msra.mxu0 0
    %1203 = vmatprep.subr.bf16.mxu0 0
    %1204 = vmatpush1.bf16.msra.mxu0 0
    %1205 = vmatprep.subr.bf16.mxu0 0
    %1206 = vmatpush1.bf16.msra.mxu0 0
    %1207 = vmatprep.subr.bf16.mxu0 0
    %1208 = vmatpush1.bf16.msra.mxu0 0
    %1209 = vmatprep.subr.bf16.mxu0 0
    %1210 = vmatpush1.bf16.msra.mxu0 0
    %1211 = vmatprep.subr.bf16.mxu0 0
    %1212 = vmatpush1.bf16.msra.mxu0 0
    %1213 = vmatprep.subr.bf16.mxu0 0
    %1214 = vmatpush1.bf16.msra.mxu0 0
    %1215 = vmatprep.subr.bf16.mxu0 0
    %1216 = vmatpush1.bf16.msra.mxu0 0
    %1217 = vmatprep.subr.bf16.mxu0 0
    %1218 = vmatpush1.bf16.msra.mxu0 0
    %1219 = vmatprep.subr.bf16.mxu0 0
    %1220 = vmatpush1.bf16.msra.mxu0 0
    %1221 = vmatprep.subr.bf16.mxu0 0
    %1222 = vmatpush1.bf16.msra.mxu0 0
    %1223 = vmatprep.subr.bf16.mxu0 0
    %1224 = vmatpush1.bf16.msra.mxu0 0
    %1225 = vmatprep.subr.bf16.mxu0 0
    %1226 = vmatpush1.bf16.msra.mxu0 0
    %1227 = vmatprep.mubr.bf16.mxu0 0
    %1228 = vmatmul.mubr.bf16.gmra.mrb[0].mxu0 %v1190
    %v1229 = vpop.f32.mrb[0].mxu0
    %v1230 = vadd.f32 0.0, %v1229
    %v1231 = vpop.f32.mrb[0].mxu0
    %v1232 = vpop.f32.mrb[0].mxu0
    %v1233 = vpop.f32.mrb[0].mxu0
    %1234 = vdwg.mxu0
    %v1235 = vpack.c.bf16 %v1230, %v1230
    %v1237 = vsel %vm137, %v1235, 0
    %1239 = vmatprep.subr.bf16.mxu0 0
    %1240 = vmatpush1.bf16.msra.mxu0 %v564
    %1241 = vmatprep.subr.bf16.mxu0 0
    %1242 = vmatpush1.bf16.msra.mxu0 0
    %1243 = vmatprep.subr.bf16.mxu0 0
    %1244 = vmatpush1.bf16.msra.mxu0 0
    %1245 = vmatprep.subr.bf16.mxu0 0
    %1246 = vmatpush1.bf16.msra.mxu0 0
    %1247 = vmatprep.subr.bf16.mxu0 0
    %1248 = vmatpush1.bf16.msra.mxu0 0
    %1249 = vmatprep.subr.bf16.mxu0 0
    %1250 = vmatpush1.bf16.msra.mxu0 0
    %1251 = vmatprep.subr.bf16.mxu0 0
    %1252 = vmatpush1.bf16.msra.mxu0 0
    %1253 = vmatprep.subr.bf16.mxu0 0
    %1254 = vmatpush1.bf16.msra.mxu0 0
    %1255 = vmatprep.subr.bf16.mxu0 0
    %1256 = vmatpush1.bf16.msra.mxu0 0
    %1257 = vmatprep.subr.bf16.mxu0 0
    %1258 = vmatpush1.bf16.msra.mxu0 0
    %1259 = vmatprep.subr.bf16.mxu0 0
    %1260 = vmatpush1.bf16.msra.mxu0 0
    %1261 = vmatprep.subr.bf16.mxu0 0
    %1262 = vmatpush1.bf16.msra.mxu0 0
    %1263 = vmatprep.subr.bf16.mxu0 0
    %1264 = vmatpush1.bf16.msra.mxu0 0
    %1265 = vmatprep.subr.bf16.mxu0 0
    %1266 = vmatpush1.bf16.msra.mxu0 0
    %1267 = vmatprep.subr.bf16.mxu0 0
    %1268 = vmatpush1.bf16.msra.mxu0 0
    %1269 = vmatprep.subr.bf16.mxu0 0
    %1270 = vmatpush1.bf16.msra.mxu0 0
    %1271 = vmatprep.mubr.bf16.mxu0 0
    %1272 = vmatmul.mubr.bf16.gmra.mrb[0].mxu0 %v1237
    %v1273 = vpop.f32.mrb[0].mxu0
    %v1274 = vadd.f32 0.0, %v1273
    %v1275 = vpop.f32.mrb[0].mxu0
    %v1276 = vpop.f32.mrb[0].mxu0
    %v1277 = vpop.f32.mrb[0].mxu0
    %1278 = vdwg.mxu0
    %v1279 = vadd.f32 %v1120, %v1274
    %1280 = vrot.lane.b32.xlu0 %v817, 104
    %v1281 = vpop.permute.xlu0 %1280
    %1282 = vrot.lane.b32.xlu0 %v817, 72
    %v1283 = vpop.permute.xlu0 %1282
    %v1285 = vsel %vm137, %v1281, 0
    %v1288 = vsel %vm137, %v1283, 0
    %1290 = vmatprep.subr.bf16.mxu0 0
    %1291 = vmatpush1.bf16.xpose.msra.mxu0 %v1288
    %1292 = vmatprep.subr.bf16.mxu0 0
    %1293 = vmatpush1.bf16.xpose.msra.mxu0 0
    %1294 = vmatprep.subr.bf16.mxu0 0
    %1295 = vmatpush1.bf16.xpose.msra.mxu0 0
    %1296 = vmatprep.subr.bf16.mxu0 0
    %1297 = vmatpush1.bf16.xpose.msra.mxu0 0
    %1298 = vmatprep.subr.bf16.mxu0 0
    %1299 = vmatpush1.bf16.xpose.msra.mxu0 0
    %1300 = vmatprep.subr.bf16.mxu0 0
    %1301 = vmatpush1.bf16.xpose.msra.mxu0 0
    %1302 = vmatprep.subr.bf16.mxu0 0
    %1303 = vmatpush1.bf16.xpose.msra.mxu0 0
    %1304 = vmatprep.subr.bf16.mxu0 0
    %1305 = vmatpush1.bf16.xpose.msra.mxu0 0
    %1306 = vmatprep.subr.bf16.mxu0 0
    %1307 = vmatpush1.bf16.xpose.msra.mxu0 0
    %1308 = vmatprep.subr.bf16.mxu0 0
    %1309 = vmatpush1.bf16.xpose.msra.mxu0 0
    %1310 = vmatprep.subr.bf16.mxu0 0
    %1311 = vmatpush1.bf16.xpose.msra.mxu0 0
    %1312 = vmatprep.subr.bf16.mxu0 0
    %1313 = vmatpush1.bf16.xpose.msra.mxu0 0
    %1314 = vmatprep.subr.bf16.mxu0 0
    %1315 = vmatpush1.bf16.xpose.msra.mxu0 0
    %1316 = vmatprep.subr.bf16.mxu0 0
    %1317 = vmatpush1.bf16.xpose.msra.mxu0 0
    %1318 = vmatprep.subr.bf16.mxu0 0
    %1319 = vmatpush1.bf16.xpose.msra.mxu0 0
    %1320 = vmatprep.subr.bf16.mxu0 0
    %1321 = vmatpush1.bf16.xpose.msra.mxu0 0
    %1322 = vmatprep.mubr.bf16.mxu0 0
    %1323 = vmatmul.mubr.bf16.gmra.mrb[0].mxu0 %v1285
    %v1324 = vpop.f32.mrb[0].mxu0
    %v1325 = vadd.f32 0.0, %v1324
    %v1326 = vpop.f32.mrb[0].mxu0
    %v1327 = vpop.f32.mrb[0].mxu0
    %v1328 = vpop.f32.mrb[0].mxu0
    %1329 = vdwg.mxu0
    %v1330 = vsel %vm137, %v1325, -inf
    %1331 = vmax.xlane.f32.xlu0 %v1330
    %v1332 = vpop.xlane.xlu0 %1331
    %v1333 = vsub.f32 %v1325, %v1332
    %v1334 = vmul.f32 %v1333, 1.442695
    %v1335 = vpow.pop %v1334
    %v1336 = vsel %vm137, %v1335, 0.0
    %1337 = vadd.xlane.f32.xlu0 %v1336
    %v1338 = vpop.xlane.xlu0 %1337
    %v1339 = vrcp.pop %v1338
    %v1340 = vmul.f32 %v1335, %v1339
    %v1341 = vpack.c.bf16 %v1340, %v1340
    %1342 = vrot.lane.b32.xlu0 %v817, 40
    %v1343 = vpop.permute.xlu0 %1342
    %v1345 = vsel %vm137, %v1341, 0
    %v1348 = vsel %vm201, %v1343, 0
    %1350 = vmatprep.subr.bf16.mxu0 0
    %1351 = vmatpush1.bf16.msra.mxu0 %v1348
    %1352 = vmatprep.subr.bf16.mxu0 0
    %1353 = vmatpush1.bf16.msra.mxu0 0
    %1354 = vmatprep.subr.bf16.mxu0 0
    %1355 = vmatpush1.bf16.msra.mxu0 0
    %1356 = vmatprep.subr.bf16.mxu0 0
    %1357 = vmatpush1.bf16.msra.mxu0 0
    %1358 = vmatprep.subr.bf16.mxu0 0
    %1359 = vmatpush1.bf16.msra.mxu0 0
    %1360 = vmatprep.subr.bf16.mxu0 0
    %1361 = vmatpush1.bf16.msra.mxu0 0
    %1362 = vmatprep.subr.bf16.mxu0 0
    %1363 = vmatpush1.bf16.msra.mxu0 0
    %1364 = vmatprep.subr.bf16.mxu0 0
    %1365 = vmatpush1.bf16.msra.mxu0 0
    %1366 = vmatprep.subr.bf16.mxu0 0
    %1367 = vmatpush1.bf16.msra.mxu0 0
    %1368 = vmatprep.subr.bf16.mxu0 0
    %1369 = vmatpush1.bf16.msra.mxu0 0
    %1370 = vmatprep.subr.bf16.mxu0 0
    %1371 = vmatpush1.bf16.msra.mxu0 0
    %1372 = vmatprep.subr.bf16.mxu0 0
    %1373 = vmatpush1.bf16.msra.mxu0 0
    %1374 = vmatprep.subr.bf16.mxu0 0
    %1375 = vmatpush1.bf16.msra.mxu0 0
    %1376 = vmatprep.subr.bf16.mxu0 0
    %1377 = vmatpush1.bf16.msra.mxu0 0
    %1378 = vmatprep.subr.bf16.mxu0 0
    %1379 = vmatpush1.bf16.msra.mxu0 0
    %1380 = vmatprep.subr.bf16.mxu0 0
    %1381 = vmatpush1.bf16.msra.mxu0 0
    %1382 = vmatprep.mubr.bf16.mxu0 0
    %1383 = vmatmul.mubr.bf16.gmra.mrb[0].mxu0 %v1345
    %v1384 = vpop.f32.mrb[0].mxu0
    %v1385 = vadd.f32 0.0, %v1384
    %v1386 = vpop.f32.mrb[0].mxu0
    %v1387 = vpop.f32.mrb[0].mxu0
    %v1388 = vpop.f32.mrb[0].mxu0
    %1389 = vdwg.mxu0
    %v1390 = vpack.c.bf16 %v1385, %v1385
    %v1392 = vsel %vm137, %v1390, 0
    %1394 = vmatprep.subr.bf16.mxu0 0
    %1395 = vmatpush1.bf16.msra.mxu0 %v722
    %1396 = vmatprep.subr.bf16.mxu0 0
    %1397 = vmatpush1.bf16.msra.mxu0 0
    %1398 = vmatprep.subr.bf16.mxu0 0
    %1399 = vmatpush1.bf16.msra.mxu0 0
    %1400 = vmatprep.subr.bf16.mxu0 0
    %1401 = vmatpush1.bf16.msra.mxu0 0
    %1402 = vmatprep.subr.bf16.mxu0 0
    %1403 = vmatpush1.bf16.msra.mxu0 0
    %1404 = vmatprep.subr.bf16.mxu0 0
    %1405 = vmatpush1.bf16.msra.mxu0 0
    %1406 = vmatprep.subr.bf16.mxu0 0
    %1407 = vmatpush1.bf16.msra.mxu0 0
    %1408 = vmatprep.subr.bf16.mxu0 0
    %1409 = vmatpush1.bf16.msra.mxu0 0
    %1410 = vmatprep.subr.bf16.mxu0 0
    %1411 = vmatpush1.bf16.msra.mxu0 0
    %1412 = vmatprep.subr.bf16.mxu0 0
    %1413 = vmatpush1.bf16.msra.mxu0 0
    %1414 = vmatprep.subr.bf16.mxu0 0
    %1415 = vmatpush1.bf16.msra.mxu0 0
    %1416 = vmatprep.subr.bf16.mxu0 0
    %1417 = vmatpush1.bf16.msra.mxu0 0
    %1418 = vmatprep.subr.bf16.mxu0 0
    %1419 = vmatpush1.bf16.msra.mxu0 0
    %1420 = vmatprep.subr.bf16.mxu0 0
    %1421 = vmatpush1.bf16.msra.mxu0 0
    %1422 = vmatprep.subr.bf16.mxu0 0
    %1423 = vmatpush1.bf16.msra.mxu0 0
    %1424 = vmatprep.subr.bf16.mxu0 0
    %1425 = vmatpush1.bf16.msra.mxu0 0
    %1426 = vmatprep.mubr.bf16.mxu0 0
    %1427 = vmatmul.mubr.bf16.gmra.mrb[0].mxu0 %v1392
    %v1428 = vpop.f32.mrb[0].mxu0
    %v1429 = vadd.f32 0.0, %v1428
    %v1430 = vpop.f32.mrb[0].mxu0
    %v1431 = vpop.f32.mrb[0].mxu0
    %v1432 = vpop.f32.mrb[0].mxu0
    %1433 = vdwg.mxu0
    %v1434 = vadd.f32 %v1279, %v1429
    %v1435 = vadd.f32 %v1434, %v766
    %v1436 = vadd.f32 %v1435, %v772
    %s1437 = scalar_lea.vmem [#allocation8], 8
    %1438 = vst.msk [vmem:[%s1437] sm:$0xff] %vm89, %v1436
    // Predicated region
    $region30: #{tpu_custom_call.1} parent=1 // pred_check
      _
    $region31: #{tpu_custom_call.1} parent=1 // pred_check_branch
      %1440 = sbr.rel (0) target = $region33
    $region32: #{tpu_custom_call.1} parent=1 // pred_region
      %s1442 = ssub.s32 256, 256
      %1443 = vsyncadd [#allocation4], %s1442
      %s1444 = sshll.u32 [#allocation8], 4
      %s1445 = int_to_ptr.vmem [resolvable:$true] %s1444
      %1450 = dma.vmem_to_hbm [thread:$0]  %s1445, 256, %s4, [#allocation4], 128, 128, 8
    $region33: #{tpu_custom_call.1} parent=1 // pred_fallthru
      _
    // Predicated region
    $region34: #{tpu_custom_call.1} parent=1 // pred_check
      _
    $region35: #{tpu_custom_call.1} parent=1 // pred_check_branch
      %1452 = sbr.rel (0) target = $region37
    $region36: #{tpu_custom_call.1} parent=1 // pred_region
      %1453 = dma.done [#allocation4], 256
    $region37: #{tpu_custom_call.1} parent=1 // pred_fallthru
      _
    %1454 = vsyncpa [#allocation3], 1
    %1455 = vsyncpa [#allocation6], 1
    %1456 = vsyncpa [#allocation4], 1

</llo_original>
